<compile_context>
chip_gen: v7x
topology: tpu7x:2x2x1
jax: 0.10.0
libtpu: 0.0.40
codegen_flags: <defaults>
</compile_context>

<pallas_src>
import functools
import math

import jax
import jax.numpy as jnp
from jax import lax
from jax.experimental import pallas as pl
from jax.experimental.pallas import tpu as pltpu


def _layer_norm(x, gamma, beta, eps=1e-5):
    # x: (N, H) f32, gamma/beta: (1, H) f32; biased variance (torch default).
    mu = jnp.mean(x, axis=-1, keepdims=True)
    var = jnp.mean((x - mu) ** 2, axis=-1, keepdims=True)
    return (x - mu) * lax.rsqrt(var + eps) * gamma + beta


def _pick_vmem_limit():
    # ~75% of physical VMEM per core: ~48 MiB on v7x, ~96 MiB on v5e/v6e.
    try:
        cap = pltpu.get_tpu_info().vmem_capacity_bytes
        return int(cap * 3 // 4)
    except Exception:
        return 48 * 1024 * 1024


def bert_stack_kernel(keep_ref, x_ref,
                      wqkv_ref, bqkv_ref, wo_ref, vec_ref,
                      w1_ref, b1_ref, w2_ref,
                      o_ref, ctx_ref, *, num_heads, ffn_chunk):
    layer = pl.program_id(1)

    Bt, T, H = x_ref.shape
    BT = Bt * T
    hd = H // num_heads
    f32 = jnp.float32
    bf16 = jnp.bfloat16

    # Residual stream = resident output block.  Its index_map is constant
    # across the layer axis, so it stays in VMEM and is written back to HBM
    # only after the last layer of this batch tile.
    @pl.when(layer == 0)
    def _():
        o_ref[...] = x_ref[...]

    x = o_ref[...].reshape(BT, H)          # (BT, H) f32 residual stream
    xb = x.astype(bf16)

    # Fused QKV projection (one wide MXU op).  Wq/bq are pre-scaled by
    # 1/sqrt(hd) on the host, so no per-score scaling is needed below.
    qkv = jnp.dot(xb, wqkv_ref[...], preferred_element_type=f32) + bqkv_ref[...]
    qb = qkv[:, :H].astype(bf16)
    kb = qkv[:, H:2 * H].astype(bf16)
    vb = qkv[:, 2 * H:].astype(bf16)

    # Packed per-layer (1, H) vectors (rows of one slab).
    bo = vec_ref[0:1, :]
    g1 = vec_ref[1:2, :]
    be1 = vec_ref[2:3, :]
    b2 = vec_ref[3:4, :]
    g2 = vec_ref[4:5, :]
    be2 = vec_ref[5:6, :]

    # Key-validity mask (host-precomputed), shared by all heads / queries.
    keep = keep_ref[...] > 0                                  # (Bt, 1, T) bool
    neg_big = f32(-1e6)

    # Multi-head attention; each head's context lands in its column slice of
    # the (BT, H) bf16 scratch so the output projection is ONE H-deep matmul.
    for h in range(num_heads):                                # static loop
        sl = slice(h * hd, (h + 1) * hd)
        qh = qb[:, sl].reshape(Bt, T, hd)
        kh = kb[:, sl].reshape(Bt, T, hd)
        vh = vb[:, sl].reshape(Bt, T, hd)
        s = jnp.einsum('bqd,bkd->bqk', qh, kh,
                       preferred_element_type=f32)            # (Bt, T, T) f32
        s = jnp.where(keep, s, neg_big)
        m = jnp.max(s, axis=-1, keepdims=True)
        e = jnp.exp(s - m)
        p = e * pl.reciprocal(jnp.sum(e, axis=-1, keepdims=True), approx=True)
        ch = jnp.einsum('bqk,bkd->bqd', p.astype(bf16), vh,
                        preferred_element_type=f32)           # (Bt, T, hd)
        ctx_ref[:, sl] = ch.reshape(BT, hd).astype(bf16)

    attn = jnp.dot(ctx_ref[...], wo_ref[...],
                   preferred_element_type=f32) + bo           # (BT, H) f32

    # AddNorm 1 (dropout = identity in eval mode).
    y = _layer_norm(x + attn, g1, be1)
    yb = y.astype(bf16)

    # Position-wise FFN, chunked along Fh to bound the live f32 intermediate.
    Fh = w1_ref.shape[1]
    n_chunks = (Fh + ffn_chunk - 1) // ffn_chunk
    ffn = jnp.zeros((BT, H), f32)
    for c in range(n_chunks):                                 # static loop
        c0 = c * ffn_chunk
        c1 = min(c0 + ffn_chunk, Fh)
        h1 = jnp.maximum(
            jnp.dot(yb, w1_ref[:, c0:c1], preferred_element_type=f32)
            + b1_ref[:, c0:c1], 0.0)
        ffn = ffn + jnp.dot(h1.astype(bf16), w2_ref[c0:c1, :],
                            preferred_element_type=f32)
    ffn = ffn + b2

    # AddNorm 2; write the residual stream back into the resident out block.
    z = _layer_norm(y + ffn, g2, be2)
    o_ref[...] = z.reshape(Bt, T, H)


def bert_encoder_blocks(x, keep_mask, sp, *, num_heads, batch_tile=None,
                        ffn_chunk=512):
    """x: (B,T,H) f32, keep_mask: (B,1,T) int32, sp: stacked/fused params."""
    B, T, H = x.shape
    L = sp["wqkv"].shape[0]
    Fh = sp["w1"].shape[-1]
    bt = batch_tile or B
    assert B % bt == 0, "batch_tile must divide batch size"
    nb = B // bt

    def wspec(d0, d1):
        # Per-layer weight slab: leading layer dim squeezed away in-kernel.
        return pl.BlockSpec((None, d0, d1), lambda b, l: (l, 0, 0))

    in_specs = [
        pl.BlockSpec((bt, 1, T), lambda b, l: (b, 0, 0)),    # keep mask
        pl.BlockSpec((bt, T, H), lambda b, l: (b, 0, 0)),    # embeddings
        wspec(H, 3 * H), wspec(1, 3 * H),                    # fused QKV w / b
        wspec(H, H),                                         # wo
        wspec(8, H),                                         # packed (1,H) vecs
        wspec(H, Fh), wspec(1, Fh), wspec(Fh, H),            # w1, b1, w2
    ]

    return pl.pallas_call(
        functools.partial(bert_stack_kernel, num_heads=num_heads,
                          ffn_chunk=min(ffn_chunk, Fh)),
        out_shape=jax.ShapeDtypeStruct((B, T, H), jnp.float32),
        grid_spec=pltpu.PrefetchScalarGridSpec(
            num_scalar_prefetch=0,
            grid=(nb, L),
            in_specs=in_specs,
            out_specs=pl.BlockSpec((bt, T, H), lambda b, l: (b, 0, 0)),
            scratch_shapes=[pltpu.VMEM((bt * T, H), jnp.bfloat16)],
        ),
        compiler_params=pltpu.CompilerParams(
            dimension_semantics=("parallel", "arbitrary"),
            vmem_limit_bytes=_pick_vmem_limit(),
        ),
    )(keep_mask, x, sp["wqkv"], sp["bqkv"], sp["wo"], sp["vecs"],
      sp["w1"], sp["b1"], sp["w2"])


def init_stacked_block_params(key, H, Fh, num_blks):
    def one(k):
        ks = jax.random.split(k, 6)
        nrm = lambda kk, s: (0.02 * jax.random.normal(kk, s)).astype(jnp.float32)
        return {
            "wq": nrm(ks[0], (H, H)), "bq": jnp.zeros((1, H), jnp.float32),
            "wk": nrm(ks[1], (H, H)), "bk": jnp.zeros((1, H), jnp.float32),
            "wv": nrm(ks[2], (H, H)), "bv": jnp.zeros((1, H), jnp.float32),
            "wo": nrm(ks[3], (H, H)), "bo": jnp.zeros((1, H), jnp.float32),
            "g1": jnp.ones((1, H), jnp.float32), "be1": jnp.zeros((1, H), jnp.float32),
            "w1": nrm(ks[4], (H, Fh)), "b1": jnp.zeros((1, Fh), jnp.float32),
            "w2": nrm(ks[5], (Fh, H)), "b2": jnp.zeros((1, H), jnp.float32),
            "g2": jnp.ones((1, H), jnp.float32), "be2": jnp.zeros((1, H), jnp.float32),
        }
    per = [one(k) for k in jax.random.split(key, num_blks)]
    return {name: jnp.stack([p[name] for p in per]) for name in per[0]}


def bert_encoder_forward(tokens, segments, valid_lens, params, *, num_heads,
                         batch_tile=None):
    # Embedding gathers are plain-JAX glue (tiny tables).
    # TODO(synk): move embedding gather into a scalar-prefetch Element-BlockSpec kernel.
    B, T = tokens.shape
    x = (params["tok_emb"][tokens]
         + params["seg_emb"][segments]
         + params["pos_emb"][:, :T, :]).astype(jnp.float32)

    blk = params["blocks"]
    H = x.shape[-1]
    L = blk["wq"].shape[0]
    hd = H // num_heads
    scale = 1.0 / math.sqrt(hd)
    bf = jnp.bfloat16

    zeros = jnp.zeros((L, 1, H), jnp.float32)
    stacked = {
        # Attention score scaling folded into the Q projection (host side);
        # Q|K|V fused along the output dim for a single in-kernel matmul.
        "wqkv": jnp.concatenate([blk["wq"] * scale, blk["wk"], blk["wv"]],
                                axis=-1).astype(bf),
        "bqkv": jnp.concatenate([blk["bq"] * scale, blk["bk"], blk["bv"]],
                                axis=-1),
        "wo": blk["wo"].astype(bf),
        # Packed (1,H) vectors: [bo, g1, be1, b2, g2, be2, pad, pad].
        "vecs": jnp.concatenate([blk["bo"], blk["g1"], blk["be1"],
                                 blk["b2"], blk["g2"], blk["be2"],
                                 zeros, zeros], axis=1),
        "w1": blk["w1"].astype(bf), "b1": blk["b1"],
        "w2": blk["w2"].astype(bf),
    }

    # d2l masked_softmax semantics: keys >= valid_len masked with -1e6.
    keep_mask = (jnp.arange(T, dtype=jnp.int32)[None, None, :]
                 < valid_lens.astype(jnp.int32).reshape(B, 1, 1)).astype(jnp.int32)

    return bert_encoder_blocks(x, keep_mask, stacked, num_heads=num_heads,
                               batch_tile=batch_tile)


if __name__ == "__main__":
    vocab_size, num_hiddens, ffn_num_hiddens = 100, 32, 64
    num_heads, num_blks, max_len = 4, 2, 16
    B, T = 2, 8

    root = jax.random.PRNGKey(0)
    k_tok, k_seg, k_pos, k_blk, k_in = jax.random.split(root, 5)

    params = {
        "tok_emb": jax.random.normal(k_tok, (vocab_size, num_hiddens), jnp.float32),
        "seg_emb": jax.random.normal(k_seg, (2, num_hiddens), jnp.float32),
        "pos_emb": jax.random.normal(k_pos, (1, max_len, num_hiddens), jnp.float32),
        "blocks": init_stacked_block_params(k_blk, num_hiddens,
                                            ffn_num_hiddens, num_blks),
    }

    k1, k2 = jax.random.split(k_in)
    tokens = jax.random.randint(k1, (B, T), 0, vocab_size, dtype=jnp.int32)
    segments = jax.random.randint(k2, (B, T), 0, 2, dtype=jnp.int32)
    valid_lens = jnp.array([T, 5], dtype=jnp.int32)

    # batch_tile=1 exercises the (parallel batch-tile, arbitrary layer) grid.
    out = bert_encoder_forward(tokens, segments, valid_lens, params,
                               num_heads=num_heads, batch_tile=1)
    out = jax.block_until_ready(out)
    assert out.shape == (B, T, num_hiddens)
    assert jnp.all(jnp.isfinite(out))
    print("KERNEL_OK")
</pallas_src>

<mosaic_0001>
module attributes {stable_mosaic.version = 11 : i64} {
  func.func @bert_stack_kernel(%arg0: i32, %arg1: i32, %arg2: memref<1x1x8xi32, #tpu.memory_space<vmem>>, %arg3: memref<1x8x32xf32, #tpu.memory_space<vmem>>, %arg4: memref<1x32x96xbf16, #tpu.memory_space<vmem>>, %arg5: memref<1x1x96xf32, #tpu.memory_space<vmem>>, %arg6: memref<1x32x32xbf16, #tpu.memory_space<vmem>>, %arg7: memref<1x8x32xf32, #tpu.memory_space<vmem>>, %arg8: memref<1x32x64xbf16, #tpu.memory_space<vmem>>, %arg9: memref<1x1x64xf32, #tpu.memory_space<vmem>>, %arg10: memref<1x64x32xbf16, #tpu.memory_space<vmem>>, %arg11: memref<1x8x32xf32, #tpu.memory_space<vmem>>, %arg12: memref<8x32xbf16, #tpu.memory_space<vmem>>) attributes {dimension_semantics = [#tpu.dimension_semantics<parallel>, #tpu.dimension_semantics<arbitrary>], iteration_bounds = array<i64: 2, 2>, scalar_prefetch = 0 : i64, scratch_operands = 1 : i64, tpu.core_type = #tpu.core_type<tc>, window_params = [{transform_indices = @transform_0, window_bounds = array<i64: 1, 1, 8>}, {transform_indices = @transform_1, window_bounds = array<i64: 1, 8, 32>}, {transform_indices = @transform_2, window_bounds = array<i64: 1, 32, 96>}, {transform_indices = @transform_3, window_bounds = array<i64: 1, 1, 96>}, {transform_indices = @transform_4, window_bounds = array<i64: 1, 32, 32>}, {transform_indices = @transform_5, window_bounds = array<i64: 1, 8, 32>}, {transform_indices = @transform_6, window_bounds = array<i64: 1, 32, 64>}, {transform_indices = @transform_7, window_bounds = array<i64: 1, 1, 64>}, {transform_indices = @transform_8, window_bounds = array<i64: 1, 64, 32>}, {transform_indices = @transform_9, window_bounds = array<i64: 1, 8, 32>}]} {
    %c0_i32 = arith.constant 0 : i32
    %0 = arith.cmpi eq, %arg1, %c0_i32 : i32
    %1 = arith.extui %0 : i1 to i32
    %c0_i32_0 = arith.constant 0 : i32
    %2 = arith.cmpi ne, %1, %c0_i32_0 : i32
    scf.if %2 {
      %c0_83 = arith.constant 0 : index
      %c0_84 = arith.constant 0 : index
      %c0_85 = arith.constant 0 : index
      %210 = vector.load %arg3[%c0_83, %c0_84, %c0_85] : memref<1x8x32xf32, #tpu.memory_space<vmem>>, vector<1x8x32xf32>
      %c0_86 = arith.constant 0 : index
      %c0_87 = arith.constant 0 : index
      %c0_88 = arith.constant 0 : index
      %211 = vector.load %arg11[%c0_86, %c0_87, %c0_88] : memref<1x8x32xf32, #tpu.memory_space<vmem>>, vector<1x8x32xf32>
      tpu.vector_store %arg11[%c0_86, %c0_87, %c0_88], %210 {strides = array<i32>} : memref<1x8x32xf32, #tpu.memory_space<vmem>>, vector<1x8x32xf32>,
    } else {
    }
    %c0 = arith.constant 0 : index
    %c0_1 = arith.constant 0 : index
    %c0_2 = arith.constant 0 : index
    %3 = vector.load %arg11[%c0, %c0_1, %c0_2] : memref<1x8x32xf32, #tpu.memory_space<vmem>>, vector<1x8x32xf32>
    %4 = vector.shape_cast %3 : vector<1x8x32xf32> to vector<8x32xf32>
    %5 = arith.truncf %4 : vector<8x32xf32> to vector<8x32xbf16>
    %c0_3 = arith.constant 0 : index
    %c0_4 = arith.constant 0 : index
    %c0_5 = arith.constant 0 : index
    %6 = vector.load %arg4[%c0_3, %c0_4, %c0_5] : memref<1x32x96xbf16, #tpu.memory_space<vmem>>, vector<1x32x96xbf16>
    %7 = vector.shape_cast %6 : vector<1x32x96xbf16> to vector<32x96xbf16>
    %cst = arith.constant dense<0.000000e+00> : vector<8x96xf32>
    %8 = tpu.matmul %5, %7, %cst {dimension_numbers = #tpu.dot_dimension_numbers<[1], [0], [0], [1], [0, 0, 1, 1], [], []>} : vector<8x32xbf16>, vector<32x96xbf16>, vector<8x96xf32> -> vector<8x96xf32>
    %c0_6 = arith.constant 0 : index
    %c0_7 = arith.constant 0 : index
    %c0_8 = arith.constant 0 : index
    %9 = vector.load %arg5[%c0_6, %c0_7, %c0_8] : memref<1x1x96xf32, #tpu.memory_space<vmem>>, vector<1x1x96xf32>
    %10 = vector.shape_cast %9 : vector<1x1x96xf32> to vector<1x96xf32>
    %11 = vector.broadcast %10 : vector<1x96xf32> to vector<8x96xf32>
    %12 = arith.addf %8, %11 : vector<8x96xf32>
    %13 = vector.extract_strided_slice %12 {offsets = [0, 0], sizes = [8, 32], strides = [1, 1]} : vector<8x96xf32> to vector<8x32xf32>
    %14 = arith.truncf %13 : vector<8x32xf32> to vector<8x32xbf16>
    %15 = vector.extract_strided_slice %12 {offsets = [0, 32], sizes = [8, 32], strides = [1, 1]} : vector<8x96xf32> to vector<8x32xf32>
    %16 = arith.truncf %15 : vector<8x32xf32> to vector<8x32xbf16>
    %17 = vector.extract_strided_slice %12 {offsets = [0, 64], sizes = [8, 32], strides = [1, 1]} : vector<8x96xf32> to vector<8x32xf32>
    %18 = arith.truncf %17 : vector<8x32xf32> to vector<8x32xbf16>
    %c0_9 = arith.constant 0 : index
    %c0_10 = arith.constant 0 : index
    %c0_11 = arith.constant 0 : index
    %19 = vector.load %arg7[%c0_9, %c0_10, %c0_11] : memref<1x8x32xf32, #tpu.memory_space<vmem>>, vector<1x1x32xf32>
    %20 = vector.shape_cast %19 : vector<1x1x32xf32> to vector<1x32xf32>
    %c0_12 = arith.constant 0 : index
    %c1 = arith.constant 1 : index
    %c0_13 = arith.constant 0 : index
    %21 = vector.load %arg7[%c0_12, %c1, %c0_13] : memref<1x8x32xf32, #tpu.memory_space<vmem>>, vector<1x1x32xf32>
    %22 = vector.shape_cast %21 : vector<1x1x32xf32> to vector<1x32xf32>
    %c0_14 = arith.constant 0 : index
    %c2 = arith.constant 2 : index
    %c0_15 = arith.constant 0 : index
    %23 = vector.load %arg7[%c0_14, %c2, %c0_15] : memref<1x8x32xf32, #tpu.memory_space<vmem>>, vector<1x1x32xf32>
    %24 = vector.shape_cast %23 : vector<1x1x32xf32> to vector<1x32xf32>
    %c0_16 = arith.constant 0 : index
    %c3 = arith.constant 3 : index
    %c0_17 = arith.constant 0 : index
    %25 = vector.load %arg7[%c0_16, %c3, %c0_17] : memref<1x8x32xf32, #tpu.memory_space<vmem>>, vector<1x1x32xf32>
    %26 = vector.shape_cast %25 : vector<1x1x32xf32> to vector<1x32xf32>
    %c0_18 = arith.constant 0 : index
    %c4 = arith.constant 4 : index
    %c0_19 = arith.constant 0 : index
    %27 = vector.load %arg7[%c0_18, %c4, %c0_19] : memref<1x8x32xf32, #tpu.memory_space<vmem>>, vector<1x1x32xf32>
    %28 = vector.shape_cast %27 : vector<1x1x32xf32> to vector<1x32xf32>
    %c0_20 = arith.constant 0 : index
    %c5 = arith.constant 5 : index
    %c0_21 = arith.constant 0 : index
    %29 = vector.load %arg7[%c0_20, %c5, %c0_21] : memref<1x8x32xf32, #tpu.memory_space<vmem>>, vector<1x1x32xf32>
    %30 = vector.shape_cast %29 : vector<1x1x32xf32> to vector<1x32xf32>
    %c0_22 = arith.constant 0 : index
    %c0_23 = arith.constant 0 : index
    %c0_24 = arith.constant 0 : index
    %31 = vector.load %arg2[%c0_22, %c0_23, %c0_24] : memref<1x1x8xi32, #tpu.memory_space<vmem>>, vector<1x1x8xi32>
    %c0_i32_25 = arith.constant 0 : i32
    %32 = vector.broadcast %c0_i32_25 : i32 to vector<1x1x8xi32>
    %33 = arith.cmpi sgt, %31, %32 : vector<1x1x8xi32>
    %34 = vector.extract_strided_slice %14 {offsets = [0, 0], sizes = [8, 8], strides = [1, 1]} : vector<8x32xbf16> to vector<8x8xbf16>
    %35 = vector.shape_cast %34 : vector<8x8xbf16> to vector<1x8x8xbf16>
    %36 = vector.extract_strided_slice %16 {offsets = [0, 0], sizes = [8, 8], strides = [1, 1]} : vector<8x32xbf16> to vector<8x8xbf16>
    %37 = vector.shape_cast %36 : vector<8x8xbf16> to vector<1x8x8xbf16>
    %38 = vector.extract_strided_slice %18 {offsets = [0, 0], sizes = [8, 8], strides = [1, 1]} : vector<8x32xbf16> to vector<8x8xbf16>
    %39 = vector.shape_cast %38 : vector<8x8xbf16> to vector<1x8x8xbf16>
    "tpu.trace_start"() <{level = 10 : i32, message = "bqd,bkd->bqk"}> : () -> ()
    %cst_26 = arith.constant dense<0.000000e+00> : vector<1x8x8xf32>
    %40 = tpu.matmul %35, %37, %cst_26 {dimension_numbers = #tpu.dot_dimension_numbers<[2], [2], [1], [1], [0, 0, 0, 1, 1, 1], [0], [0]>} : vector<1x8x8xbf16>, vector<1x8x8xbf16>, vector<1x8x8xf32> -> vector<1x8x8xf32>
    %cst_27 = arith.constant -1.000000e+06 : f32
    "tpu.trace_stop"() : () -> ()
    %41 = vector.shape_cast %33 : vector<1x1x8xi1> to vector<1x1x8xi1>
    %42 = vector.broadcast %41 : vector<1x1x8xi1> to vector<1x8x8xi1>
    %43 = vector.broadcast %cst_27 : f32 to vector<1x8x8xf32>
    %44 = arith.select %42, %40, %43 : vector<1x8x8xi1>, vector<1x8x8xf32>
    %cst_28 = arith.constant dense<0xFF800000> : vector<1x8xf32>
    %45 = vector.multi_reduction <maximumf>, %44, %cst_28 [2] : vector<1x8x8xf32> to vector<1x8xf32>
    %46 = vector.shape_cast %45 : vector<1x8xf32> to vector<1x8x1xf32>
    %47 = vector.broadcast %46 : vector<1x8x1xf32> to vector<1x8x8xf32>
    %48 = arith.subf %44, %47 : vector<1x8x8xf32>
    %49 = math.exp %48 : vector<1x8x8xf32>
    %cst_29 = arith.constant dense<0.000000e+00> : vector<1x8xf32>
    %50 = vector.multi_reduction <add>, %49, %cst_29 [2] : vector<1x8x8xf32> to vector<1x8xf32>
    %51 = vector.shape_cast %50 : vector<1x8xf32> to vector<1x8x1xf32>
    %52 = tpu.reciprocal %51 {approx = true} : vector<1x8x1xf32> -> vector<1x8x1xf32>
    %53 = vector.broadcast %52 : vector<1x8x1xf32> to vector<1x8x8xf32>
    %54 = arith.mulf %49, %53 : vector<1x8x8xf32>
    %55 = arith.truncf %54 : vector<1x8x8xf32> to vector<1x8x8xbf16>
    "tpu.trace_start"() <{level = 10 : i32, message = "bqk,bkd->bqd"}> : () -> ()
    %cst_30 = arith.constant dense<0.000000e+00> : vector<1x8x8xf32>
    %56 = tpu.matmul %55, %39, %cst_30 {dimension_numbers = #tpu.dot_dimension_numbers<[2], [1], [1], [2], [0, 0, 0, 1, 1, 2], [0], [0]>} : vector<1x8x8xbf16>, vector<1x8x8xbf16>, vector<1x8x8xf32> -> vector<1x8x8xf32>
    "tpu.trace_stop"() : () -> ()
    %57 = vector.shape_cast %56 : vector<1x8x8xf32> to vector<8x8xf32>
    %58 = arith.truncf %57 : vector<8x8xf32> to vector<8x8xbf16>
    %c0_31 = arith.constant 0 : index
    %c0_32 = arith.constant 0 : index
    %59 = vector.load %arg12[%c0_31, %c0_32] : memref<8x32xbf16, #tpu.memory_space<vmem>>, vector<8x8xbf16>
    tpu.vector_store %arg12[%c0_31, %c0_32], %58 {strides = array<i32>} : memref<8x32xbf16, #tpu.memory_space<vmem>>, vector<8x8xbf16>,
    %60 = vector.extract_strided_slice %14 {offsets = [0, 8], sizes = [8, 8], strides = [1, 1]} : vector<8x32xbf16> to vector<8x8xbf16>
    %61 = vector.shape_cast %60 : vector<8x8xbf16> to vector<1x8x8xbf16>
    %62 = vector.extract_strided_slice %16 {offsets = [0, 8], sizes = [8, 8], strides = [1, 1]} : vector<8x32xbf16> to vector<8x8xbf16>
    %63 = vector.shape_cast %62 : vector<8x8xbf16> to vector<1x8x8xbf16>
    %64 = vector.extract_strided_slice %18 {offsets = [0, 8], sizes = [8, 8], strides = [1, 1]} : vector<8x32xbf16> to vector<8x8xbf16>
    %65 = vector.shape_cast %64 : vector<8x8xbf16> to vector<1x8x8xbf16>
    "tpu.trace_start"() <{level = 10 : i32, message = "bqd,bkd->bqk"}> : () -> ()
    %cst_33 = arith.constant dense<0.000000e+00> : vector<1x8x8xf32>
    %66 = tpu.matmul %61, %63, %cst_33 {dimension_numbers = #tpu.dot_dimension_numbers<[2], [2], [1], [1], [0, 0, 0, 1, 1, 1], [0], [0]>} : vector<1x8x8xbf16>, vector<1x8x8xbf16>, vector<1x8x8xf32> -> vector<1x8x8xf32>
    %cst_34 = arith.constant -1.000000e+06 : f32
    "tpu.trace_stop"() : () -> ()
    %67 = vector.shape_cast %33 : vector<1x1x8xi1> to vector<1x1x8xi1>
    %68 = vector.broadcast %67 : vector<1x1x8xi1> to vector<1x8x8xi1>
    %69 = vector.broadcast %cst_34 : f32 to vector<1x8x8xf32>
    %70 = arith.select %68, %66, %69 : vector<1x8x8xi1>, vector<1x8x8xf32>
    %cst_35 = arith.constant dense<0xFF800000> : vector<1x8xf32>
    %71 = vector.multi_reduction <maximumf>, %70, %cst_35 [2] : vector<1x8x8xf32> to vector<1x8xf32>
    %72 = vector.shape_cast %71 : vector<1x8xf32> to vector<1x8x1xf32>
    %73 = vector.broadcast %72 : vector<1x8x1xf32> to vector<1x8x8xf32>
    %74 = arith.subf %70, %73 : vector<1x8x8xf32>
    %75 = math.exp %74 : vector<1x8x8xf32>
    %cst_36 = arith.constant dense<0.000000e+00> : vector<1x8xf32>
    %76 = vector.multi_reduction <add>, %75, %cst_36 [2] : vector<1x8x8xf32> to vector<1x8xf32>
    %77 = vector.shape_cast %76 : vector<1x8xf32> to vector<1x8x1xf32>
    %78 = tpu.reciprocal %77 {approx = true} : vector<1x8x1xf32> -> vector<1x8x1xf32>
    %79 = vector.broadcast %78 : vector<1x8x1xf32> to vector<1x8x8xf32>
    %80 = arith.mulf %75, %79 : vector<1x8x8xf32>
    %81 = arith.truncf %80 : vector<1x8x8xf32> to vector<1x8x8xbf16>
    "tpu.trace_start"() <{level = 10 : i32, message = "bqk,bkd->bqd"}> : () -> ()
    %cst_37 = arith.constant dense<0.000000e+00> : vector<1x8x8xf32>
    %82 = tpu.matmul %81, %65, %cst_37 {dimension_numbers = #tpu.dot_dimension_numbers<[2], [1], [1], [2], [0, 0, 0, 1, 1, 2], [0], [0]>} : vector<1x8x8xbf16>, vector<1x8x8xbf16>, vector<1x8x8xf32> -> vector<1x8x8xf32>
    "tpu.trace_stop"() : () -> ()
    %83 = vector.shape_cast %82 : vector<1x8x8xf32> to vector<8x8xf32>
    %84 = arith.truncf %83 : vector<8x8xf32> to vector<8x8xbf16>
    %c0_38 = arith.constant 0 : index
    %c8 = arith.constant 8 : index
    %85 = vector.load %arg12[%c0_38, %c8] : memref<8x32xbf16, #tpu.memory_space<vmem>>, vector<8x8xbf16>
    tpu.vector_store %arg12[%c0_38, %c8], %84 {strides = array<i32>} : memref<8x32xbf16, #tpu.memory_space<vmem>>, vector<8x8xbf16>,
    %86 = vector.extract_strided_slice %14 {offsets = [0, 16], sizes = [8, 8], strides = [1, 1]} : vector<8x32xbf16> to vector<8x8xbf16>
    %87 = vector.shape_cast %86 : vector<8x8xbf16> to vector<1x8x8xbf16>
    %88 = vector.extract_strided_slice %16 {offsets = [0, 16], sizes = [8, 8], strides = [1, 1]} : vector<8x32xbf16> to vector<8x8xbf16>
    %89 = vector.shape_cast %88 : vector<8x8xbf16> to vector<1x8x8xbf16>
    %90 = vector.extract_strided_slice %18 {offsets = [0, 16], sizes = [8, 8], strides = [1, 1]} : vector<8x32xbf16> to vector<8x8xbf16>
    %91 = vector.shape_cast %90 : vector<8x8xbf16> to vector<1x8x8xbf16>
    "tpu.trace_start"() <{level = 10 : i32, message = "bqd,bkd->bqk"}> : () -> ()
    %cst_39 = arith.constant dense<0.000000e+00> : vector<1x8x8xf32>
    %92 = tpu.matmul %87, %89, %cst_39 {dimension_numbers = #tpu.dot_dimension_numbers<[2], [2], [1], [1], [0, 0, 0, 1, 1, 1], [0], [0]>} : vector<1x8x8xbf16>, vector<1x8x8xbf16>, vector<1x8x8xf32> -> vector<1x8x8xf32>
    %cst_40 = arith.constant -1.000000e+06 : f32
    "tpu.trace_stop"() : () -> ()
    %93 = vector.shape_cast %33 : vector<1x1x8xi1> to vector<1x1x8xi1>
    %94 = vector.broadcast %93 : vector<1x1x8xi1> to vector<1x8x8xi1>
    %95 = vector.broadcast %cst_40 : f32 to vector<1x8x8xf32>
    %96 = arith.select %94, %92, %95 : vector<1x8x8xi1>, vector<1x8x8xf32>
    %cst_41 = arith.constant dense<0xFF800000> : vector<1x8xf32>
    %97 = vector.multi_reduction <maximumf>, %96, %cst_41 [2] : vector<1x8x8xf32> to vector<1x8xf32>
    %98 = vector.shape_cast %97 : vector<1x8xf32> to vector<1x8x1xf32>
    %99 = vector.broadcast %98 : vector<1x8x1xf32> to vector<1x8x8xf32>
    %100 = arith.subf %96, %99 : vector<1x8x8xf32>
    %101 = math.exp %100 : vector<1x8x8xf32>
    %cst_42 = arith.constant dense<0.000000e+00> : vector<1x8xf32>
    %102 = vector.multi_reduction <add>, %101, %cst_42 [2] : vector<1x8x8xf32> to vector<1x8xf32>
    %103 = vector.shape_cast %102 : vector<1x8xf32> to vector<1x8x1xf32>
    %104 = tpu.reciprocal %103 {approx = true} : vector<1x8x1xf32> -> vector<1x8x1xf32>
    %105 = vector.broadcast %104 : vector<1x8x1xf32> to vector<1x8x8xf32>
    %106 = arith.mulf %101, %105 : vector<1x8x8xf32>
    %107 = arith.truncf %106 : vector<1x8x8xf32> to vector<1x8x8xbf16>
    "tpu.trace_start"() <{level = 10 : i32, message = "bqk,bkd->bqd"}> : () -> ()
    %cst_43 = arith.constant dense<0.000000e+00> : vector<1x8x8xf32>
    %108 = tpu.matmul %107, %91, %cst_43 {dimension_numbers = #tpu.dot_dimension_numbers<[2], [1], [1], [2], [0, 0, 0, 1, 1, 2], [0], [0]>} : vector<1x8x8xbf16>, vector<1x8x8xbf16>, vector<1x8x8xf32> -> vector<1x8x8xf32>
    "tpu.trace_stop"() : () -> ()
    %109 = vector.shape_cast %108 : vector<1x8x8xf32> to vector<8x8xf32>
    %110 = arith.truncf %109 : vector<8x8xf32> to vector<8x8xbf16>
    %c0_44 = arith.constant 0 : index
    %c16 = arith.constant 16 : index
    %111 = vector.load %arg12[%c0_44, %c16] : memref<8x32xbf16, #tpu.memory_space<vmem>>, vector<8x8xbf16>
    tpu.vector_store %arg12[%c0_44, %c16], %110 {strides = array<i32>} : memref<8x32xbf16, #tpu.memory_space<vmem>>, vector<8x8xbf16>,
    %112 = vector.extract_strided_slice %14 {offsets = [0, 24], sizes = [8, 8], strides = [1, 1]} : vector<8x32xbf16> to vector<8x8xbf16>
    %113 = vector.shape_cast %112 : vector<8x8xbf16> to vector<1x8x8xbf16>
    %114 = vector.extract_strided_slice %16 {offsets = [0, 24], sizes = [8, 8], strides = [1, 1]} : vector<8x32xbf16> to vector<8x8xbf16>
    %115 = vector.shape_cast %114 : vector<8x8xbf16> to vector<1x8x8xbf16>
    %116 = vector.extract_strided_slice %18 {offsets = [0, 24], sizes = [8, 8], strides = [1, 1]} : vector<8x32xbf16> to vector<8x8xbf16>
    %117 = vector.shape_cast %116 : vector<8x8xbf16> to vector<1x8x8xbf16>
    "tpu.trace_start"() <{level = 10 : i32, message = "bqd,bkd->bqk"}> : () -> ()
    %cst_45 = arith.constant dense<0.000000e+00> : vector<1x8x8xf32>
    %118 = tpu.matmul %113, %115, %cst_45 {dimension_numbers = #tpu.dot_dimension_numbers<[2], [2], [1], [1], [0, 0, 0, 1, 1, 1], [0], [0]>} : vector<1x8x8xbf16>, vector<1x8x8xbf16>, vector<1x8x8xf32> -> vector<1x8x8xf32>
    %cst_46 = arith.constant -1.000000e+06 : f32
    "tpu.trace_stop"() : () -> ()
    %119 = vector.shape_cast %33 : vector<1x1x8xi1> to vector<1x1x8xi1>
    %120 = vector.broadcast %119 : vector<1x1x8xi1> to vector<1x8x8xi1>
    %121 = vector.broadcast %cst_46 : f32 to vector<1x8x8xf32>
    %122 = arith.select %120, %118, %121 : vector<1x8x8xi1>, vector<1x8x8xf32>
    %cst_47 = arith.constant dense<0xFF800000> : vector<1x8xf32>
    %123 = vector.multi_reduction <maximumf>, %122, %cst_47 [2] : vector<1x8x8xf32> to vector<1x8xf32>
    %124 = vector.shape_cast %123 : vector<1x8xf32> to vector<1x8x1xf32>
    %125 = vector.broadcast %124 : vector<1x8x1xf32> to vector<1x8x8xf32>
    %126 = arith.subf %122, %125 : vector<1x8x8xf32>
    %127 = math.exp %126 : vector<1x8x8xf32>
    %cst_48 = arith.constant dense<0.000000e+00> : vector<1x8xf32>
    %128 = vector.multi_reduction <add>, %127, %cst_48 [2] : vector<1x8x8xf32> to vector<1x8xf32>
    %129 = vector.shape_cast %128 : vector<1x8xf32> to vector<1x8x1xf32>
    %130 = tpu.reciprocal %129 {approx = true} : vector<1x8x1xf32> -> vector<1x8x1xf32>
    %131 = vector.broadcast %130 : vector<1x8x1xf32> to vector<1x8x8xf32>
    %132 = arith.mulf %127, %131 : vector<1x8x8xf32>
    %133 = arith.truncf %132 : vector<1x8x8xf32> to vector<1x8x8xbf16>
    "tpu.trace_start"() <{level = 10 : i32, message = "bqk,bkd->bqd"}> : () -> ()
    %cst_49 = arith.constant dense<0.000000e+00> : vector<1x8x8xf32>
    %134 = tpu.matmul %133, %117, %cst_49 {dimension_numbers = #tpu.dot_dimension_numbers<[2], [1], [1], [2], [0, 0, 0, 1, 1, 2], [0], [0]>} : vector<1x8x8xbf16>, vector<1x8x8xbf16>, vector<1x8x8xf32> -> vector<1x8x8xf32>
    "tpu.trace_stop"() : () -> ()
    %135 = vector.shape_cast %134 : vector<1x8x8xf32> to vector<8x8xf32>
    %136 = arith.truncf %135 : vector<8x8xf32> to vector<8x8xbf16>
    %c0_50 = arith.constant 0 : index
    %c24 = arith.constant 24 : index
    %137 = vector.load %arg12[%c0_50, %c24] : memref<8x32xbf16, #tpu.memory_space<vmem>>, vector<8x8xbf16>
    tpu.vector_store %arg12[%c0_50, %c24], %136 {strides = array<i32>} : memref<8x32xbf16, #tpu.memory_space<vmem>>, vector<8x8xbf16>,
    %c0_51 = arith.constant 0 : index
    %c0_52 = arith.constant 0 : index
    %138 = vector.load %arg12[%c0_51, %c0_52] : memref<8x32xbf16, #tpu.memory_space<vmem>>, vector<8x32xbf16>
    %c0_53 = arith.constant 0 : index
    %c0_54 = arith.constant 0 : index
    %c0_55 = arith.constant 0 : index
    %139 = vector.load %arg6[%c0_53, %c0_54, %c0_55] : memref<1x32x32xbf16, #tpu.memory_space<vmem>>, vector<1x32x32xbf16>
    %140 = vector.shape_cast %139 : vector<1x32x32xbf16> to vector<32x32xbf16>
    %cst_56 = arith.constant dense<0.000000e+00> : vector<8x32xf32>
    %141 = tpu.matmul %138, %140, %cst_56 {dimension_numbers = #tpu.dot_dimension_numbers<[1], [0], [0], [1], [0, 0, 1, 1], [], []>} : vector<8x32xbf16>, vector<32x32xbf16>, vector<8x32xf32> -> vector<8x32xf32>
    %142 = vector.broadcast %20 : vector<1x32xf32> to vector<8x32xf32>
    %143 = arith.addf %141, %142 : vector<8x32xf32>
    %144 = arith.addf %4, %143 : vector<8x32xf32>
    %cst_57 = arith.constant dense<0.000000e+00> : vector<8xf32>
    %145 = vector.multi_reduction <add>, %144, %cst_57 [1] : vector<8x32xf32> to vector<8xf32>
    %146 = vector.shape_cast %145 : vector<8xf32> to vector<8x1xf32>
    %cst_58 = arith.constant 3.200000e+01 : f32
    %147 = vector.broadcast %cst_58 : f32 to vector<8x1xf32>
    %148 = arith.divf %146, %147 : vector<8x1xf32>
    %149 = vector.broadcast %148 : vector<8x1xf32> to vector<8x32xf32>
    %150 = arith.subf %144, %149 : vector<8x32xf32>
    %151 = arith.mulf %150, %150 : vector<8x32xf32>
    %cst_59 = arith.constant dense<0.000000e+00> : vector<8xf32>
    %152 = vector.multi_reduction <add>, %151, %cst_59 [1] : vector<8x32xf32> to vector<8xf32>
    %153 = vector.shape_cast %152 : vector<8xf32> to vector<8x1xf32>
    %cst_60 = arith.constant 3.200000e+01 : f32
    %154 = vector.broadcast %cst_60 : f32 to vector<8x1xf32>
    %155 = arith.divf %153, %154 : vector<8x1xf32>
    %156 = vector.broadcast %148 : vector<8x1xf32> to vector<8x32xf32>
    %157 = arith.subf %144, %156 : vector<8x32xf32>
    %cst_61 = arith.constant 9.99999974E-6 : f32
    %158 = vector.broadcast %cst_61 : f32 to vector<8x1xf32>
    %159 = arith.addf %155, %158 : vector<8x1xf32>
    %160 = math.rsqrt %159 : vector<8x1xf32>
    %161 = vector.broadcast %160 : vector<8x1xf32> to vector<8x32xf32>
    %162 = arith.mulf %157, %161 : vector<8x32xf32>
    %163 = vector.broadcast %22 : vector<1x32xf32> to vector<8x32xf32>
    %164 = arith.mulf %162, %163 : vector<8x32xf32>
    %165 = vector.broadcast %24 : vector<1x32xf32> to vector<8x32xf32>
    %166 = arith.addf %164, %165 : vector<8x32xf32>
    %167 = arith.truncf %166 : vector<8x32xf32> to vector<8x32xbf16>
    %cst_62 = arith.constant 0.000000e+00 : f32
    %168 = vector.broadcast %cst_62 : f32 to vector<8x32xf32>
    %c0_63 = arith.constant 0 : index
    %c0_64 = arith.constant 0 : index
    %c0_65 = arith.constant 0 : index
    %169 = vector.load %arg8[%c0_63, %c0_64, %c0_65] : memref<1x32x64xbf16, #tpu.memory_space<vmem>>, vector<1x32x64xbf16>
    %170 = vector.shape_cast %169 : vector<1x32x64xbf16> to vector<32x64xbf16>
    %cst_66 = arith.constant dense<0.000000e+00> : vector<8x64xf32>
    %171 = tpu.matmul %167, %170, %cst_66 {dimension_numbers = #tpu.dot_dimension_numbers<[1], [0], [0], [1], [0, 0, 1, 1], [], []>} : vector<8x32xbf16>, vector<32x64xbf16>, vector<8x64xf32> -> vector<8x64xf32>
    %c0_67 = arith.constant 0 : index
    %c0_68 = arith.constant 0 : index
    %c0_69 = arith.constant 0 : index
    %172 = vector.load %arg9[%c0_67, %c0_68, %c0_69] : memref<1x1x64xf32, #tpu.memory_space<vmem>>, vector<1x1x64xf32>
    %173 = vector.shape_cast %172 : vector<1x1x64xf32> to vector<1x64xf32>
    %174 = vector.broadcast %173 : vector<1x64xf32> to vector<8x64xf32>
    %175 = arith.addf %171, %174 : vector<8x64xf32>
    %cst_70 = arith.constant 0.000000e+00 : f32
    %176 = vector.broadcast %cst_70 : f32 to vector<8x64xf32>
    %177 = arith.maximumf %175, %176 : vector<8x64xf32>
    %178 = arith.truncf %177 : vector<8x64xf32> to vector<8x64xbf16>
    %c0_71 = arith.constant 0 : index
    %c0_72 = arith.constant 0 : index
    %c0_73 = arith.constant 0 : index
    %179 = vector.load %arg10[%c0_71, %c0_72, %c0_73] : memref<1x64x32xbf16, #tpu.memory_space<vmem>>, vector<1x64x32xbf16>
    %180 = vector.shape_cast %179 : vector<1x64x32xbf16> to vector<64x32xbf16>
    %cst_74 = arith.constant dense<0.000000e+00> : vector<8x32xf32>
    %181 = tpu.matmul %178, %180, %cst_74 {dimension_numbers = #tpu.dot_dimension_numbers<[1], [0], [0], [1], [0, 0, 1, 1], [], []>} : vector<8x64xbf16>, vector<64x32xbf16>, vector<8x32xf32> -> vector<8x32xf32>
    %182 = arith.addf %168, %181 : vector<8x32xf32>
    %183 = vector.broadcast %26 : vector<1x32xf32> to vector<8x32xf32>
    %184 = arith.addf %182, %183 : vector<8x32xf32>
    %185 = arith.addf %166, %184 : vector<8x32xf32>
    %cst_75 = arith.constant dense<0.000000e+00> : vector<8xf32>
    %186 = vector.multi_reduction <add>, %185, %cst_75 [1] : vector<8x32xf32> to vector<8xf32>
    %187 = vector.shape_cast %186 : vector<8xf32> to vector<8x1xf32>
    %cst_76 = arith.constant 3.200000e+01 : f32
    %188 = vector.broadcast %cst_76 : f32 to vector<8x1xf32>
    %189 = arith.divf %187, %188 : vector<8x1xf32>
    %190 = vector.broadcast %189 : vector<8x1xf32> to vector<8x32xf32>
    %191 = arith.subf %185, %190 : vector<8x32xf32>
    %192 = arith.mulf %191, %191 : vector<8x32xf32>
    %cst_77 = arith.constant dense<0.000000e+00> : vector<8xf32>
    %193 = vector.multi_reduction <add>, %192, %cst_77 [1] : vector<8x32xf32> to vector<8xf32>
    %194 = vector.shape_cast %193 : vector<8xf32> to vector<8x1xf32>
    %cst_78 = arith.constant 3.200000e+01 : f32
    %195 = vector.broadcast %cst_78 : f32 to vector<8x1xf32>
    %196 = arith.divf %194, %195 : vector<8x1xf32>
    %197 = vector.broadcast %189 : vector<8x1xf32> to vector<8x32xf32>
    %198 = arith.subf %185, %197 : vector<8x32xf32>
    %cst_79 = arith.constant 9.99999974E-6 : f32
    %199 = vector.broadcast %cst_79 : f32 to vector<8x1xf32>
    %200 = arith.addf %196, %199 : vector<8x1xf32>
    %201 = math.rsqrt %200 : vector<8x1xf32>
    %202 = vector.broadcast %201 : vector<8x1xf32> to vector<8x32xf32>
    %203 = arith.mulf %198, %202 : vector<8x32xf32>
    %204 = vector.broadcast %28 : vector<1x32xf32> to vector<8x32xf32>
    %205 = arith.mulf %203, %204 : vector<8x32xf32>
    %206 = vector.broadcast %30 : vector<1x32xf32> to vector<8x32xf32>
    %207 = arith.addf %205, %206 : vector<8x32xf32>
    %208 = vector.shape_cast %207 : vector<8x32xf32> to vector<1x8x32xf32>
    %c0_80 = arith.constant 0 : index
    %c0_81 = arith.constant 0 : index
    %c0_82 = arith.constant 0 : index
    %209 = vector.load %arg11[%c0_80, %c0_81, %c0_82] : memref<1x8x32xf32, #tpu.memory_space<vmem>>, vector<1x8x32xf32>
    tpu.vector_store %arg11[%c0_80, %c0_81, %c0_82], %208 {strides = array<i32>} : memref<1x8x32xf32, #tpu.memory_space<vmem>>, vector<1x8x32xf32>,
    return
  }
  func.func @transform_0(%arg0: i32, %arg1: i32) -> (i32, i32, i32) {
    %c0_i32 = arith.constant 0 : i32
    %c0_i32_0 = arith.constant 0 : i32
    %c0_i32_1 = arith.constant 0 : i32
    return %arg0, %c0_i32, %c0_i32_0 : i32, i32, i32
  }
  func.func @transform_1(%arg0: i32, %arg1: i32) -> (i32, i32, i32) {
    %c0_i32 = arith.constant 0 : i32
    %c0_i32_0 = arith.constant 0 : i32
    %c0_i32_1 = arith.constant 0 : i32
    return %arg0, %c0_i32, %c0_i32_0 : i32, i32, i32
  }
  func.func @transform_2(%arg0: i32, %arg1: i32) -> (i32, i32, i32) {
    %c0_i32 = arith.constant 0 : i32
    %c0_i32_0 = arith.constant 0 : i32
    %c0_i32_1 = arith.constant 0 : i32
    return %arg1, %c0_i32, %c0_i32_0 : i32, i32, i32
  }
  func.func @transform_3(%arg0: i32, %arg1: i32) -> (i32, i32, i32) {
    %c0_i32 = arith.constant 0 : i32
    %c0_i32_0 = arith.constant 0 : i32
    %c0_i32_1 = arith.constant 0 : i32
    return %arg1, %c0_i32, %c0_i32_0 : i32, i32, i32
  }
  func.func @transform_4(%arg0: i32, %arg1: i32) -> (i32, i32, i32) {
    %c0_i32 = arith.constant 0 : i32
    %c0_i32_0 = arith.constant 0 : i32
    %c0_i32_1 = arith.constant 0 : i32
    return %arg1, %c0_i32, %c0_i32_0 : i32, i32, i32
  }
  func.func @transform_5(%arg0: i32, %arg1: i32) -> (i32, i32, i32) {
    %c0_i32 = arith.constant 0 : i32
    %c0_i32_0 = arith.constant 0 : i32
    %c0_i32_1 = arith.constant 0 : i32
    return %arg1, %c0_i32, %c0_i32_0 : i32, i32, i32
  }
  func.func @transform_6(%arg0: i32, %arg1: i32) -> (i32, i32, i32) {
    %c0_i32 = arith.constant 0 : i32
    %c0_i32_0 = arith.constant 0 : i32
    %c0_i32_1 = arith.constant 0 : i32
    return %arg1, %c0_i32, %c0_i32_0 : i32, i32, i32
  }
  func.func @transform_7(%arg0: i32, %arg1: i32) -> (i32, i32, i32) {
    %c0_i32 = arith.constant 0 : i32
    %c0_i32_0 = arith.constant 0 : i32
    %c0_i32_1 = arith.constant 0 : i32
    return %arg1, %c0_i32, %c0_i32_0 : i32, i32, i32
  }
  func.func @transform_8(%arg0: i32, %arg1: i32) -> (i32, i32, i32) {
    %c0_i32 = arith.constant 0 : i32
    %c0_i32_0 = arith.constant 0 : i32
    %c0_i32_1 = arith.constant 0 : i32
    return %arg1, %c0_i32, %c0_i32_0 : i32, i32, i32
  }
  func.func @transform_9(%arg0: i32, %arg1: i32) -> (i32, i32, i32) {
    %c0_i32 = arith.constant 0 : i32
    %c0_i32_0 = arith.constant 0 : i32
    %c0_i32_1 = arith.constant 0 : i32
    return %arg0, %c0_i32, %c0_i32_0 : i32, i32, i32
  }
}

</mosaic_0001>

<llo_original>
// kernel: tpu_custom_call.1
$region0: #{tpu_custom_call.1}
  #allocation0 [shape = 'u32[]', space=smem, size = 0x4, offset = 0x4, fixed_abs, tag = 'smem constant byte address 0x4 - core index']
  #allocation1 [shape = 'u32[144,128]{1,0:T(1,128)}', space=vmem, size = 0x12000, scoped, tag = 'internal scratch']
  #allocation2 [shape = 'bf16[8,32]{1,0:T(8,128)(2,1)}', space=vmem, size = 0x800, scoped, tag = 'scratch operand']
  %s0 = inlined_call_operand.hbm [shape: s32[2,1,8], index: 0, kind: input, shape index: {}]
  %s1 = inlined_call_operand.hbm [shape: f32[2,8,32], index: 1, kind: input, shape index: {}]
  %s2 = inlined_call_operand.vmem [shape: bf16[2,32,96], index: 2, kind: input, shape index: {}]
  %s3 = inlined_call_operand.vmem [shape: f32[2,1,96], index: 3, kind: input, shape index: {}]
  %s4 = inlined_call_operand.vmem [shape: bf16[2,32,32], index: 4, kind: input, shape index: {}]
  %s5 = inlined_call_operand.vmem [shape: f32[2,8,32], index: 5, kind: input, shape index: {}]
  %s6 = inlined_call_operand.vmem [shape: bf16[2,32,64], index: 6, kind: input, shape index: {}]
  %s7 = inlined_call_operand.vmem [shape: f32[2,1,64], index: 7, kind: input, shape index: {}]
  %s8 = inlined_call_operand.vmem [shape: bf16[2,64,32], index: 8, kind: input, shape index: {}]
  %s9 = inlined_call_operand.hbm [shape: f32[2,8,32], index: 9, kind: output, shape index: {}]
  %s10 = sld [smem:[#allocation0]]
  $region81: #{tpu_custom_call.1} parent=0
    _
  %s12 = ssub.s32 1, %s10
  %s13 = scalar_select 0, %s12, %s10
  $region1: #{tpu_custom_call.1} parent=0
    #allocation3 [shape = 'u8[1024]{0}', space=vmem, size = 0x400, scoped, tag = 'input window, operand 0']
    #allocation4 [shape = 's32[2]{0}', space=sflag, size = 0x8, scoped, tag = 'scoped memory for tpu_custom_call.1']
    #allocation5 [shape = 's32[2]{0}', space=sflag, size = 0x8, scoped, tag = 'scoped memory for tpu_custom_call.1']
    #allocation6 [shape = 'u8[8192]{0}', space=vmem, size = 0x2000, scoped, tag = 'input window, operand 1']
    #allocation7 [shape = 's32[2]{0}', space=sflag, size = 0x8, scoped, tag = 'scoped memory for tpu_custom_call.1']
    #allocation8 [shape = 'u8[8192]{0}', space=vmem, size = 0x2000, scoped, tag = 'output window, operand 0']
    %14 = vsyncpa [#allocation4], 0
    %s15 = scalar_lea.sflag [#allocation4], 1
    %16 = vsyncpa %s15, 0
    %17 = vsyncpa [#allocation7], 0
    %s18 = scalar_lea.sflag [#allocation7], 1
    %19 = vsyncpa %s18, 0
    %20 = vsyncpa [#allocation5], 0
    %s21 = scalar_lea.sflag [#allocation5], 1
    %22 = vsyncpa %s21, 0
    loop: start=0, step=1, limit=6
    $region2: #{tpu_custom_call.1} parent=1 // loop_pre_header
      _
    $region3: #{tpu_custom_call.1} parent=1 // loop_header
      %s24 = sphi 0, %s28
      %p25 = scmp.ge.s32.totalorder %s24, 6
      %s31 = sphi 0, %s43
      %s32 = sphi 0, %s39
      %s33 = sphi 0, %s31
      %s34 = sphi 0, %s32
      %s35 = sphi 0, %s33
      %s36 = sphi 0, %s34
      %s46 = sphi 0, %s48
      %s49 = sphi 0, %s46
      %s50 = sphi 0, %s49
      %s66 = sphi 0, %s50
      %s72 = sphi 0, %s74
      %s75 = sphi 0, %s72
      %s76 = sphi 0, %s75
      %s92 = sphi 0, %s76
      %s98 = sphi 0, %s100
      %s101 = sphi 0, %s98
      %s102 = sphi 0, %s101
      %s118 = sphi 0, %s102
      %s124 = sphi 0, %s126
      %s127 = sphi 0, %s124
      %s128 = sphi 0, %s127
      %s144 = sphi 0, %s128
      %s150 = sphi 0, %s152
      %s153 = sphi 0, %s150
      %s154 = sphi 0, %s153
      %s170 = sphi 0, %s154
      %s176 = sphi 0, %s178
      %s179 = sphi 0, %s176
      %s180 = sphi 0, %s179
      %s196 = sphi 0, %s180
      %s202 = sphi 0, %s204
      %s205 = sphi 0, %s202
      %s206 = sphi 0, %s205
      %s222 = sphi 0, %s206
      %s228 = sphi 0, %s230
      %s231 = sphi 0, %s228
      %s232 = sphi 0, %s231
      %s248 = sphi 0, %s232
      %s254 = sphi 0, %s256
      %s257 = sphi 0, %s254
      %s258 = sphi 0, %s257
      %s274 = sphi 0, %s258
      %s280 = sphi 0, %s282
      %s283 = sphi 0, %s280
      %s284 = sphi 0, %s283
      %s300 = sphi 0, %s284
    $region4: #{tpu_custom_call.1} parent=1 // loop_header_branch
      %27 = sbr.rel (%p25) target = $region8
    $region5: #{tpu_custom_call.1} parent=1 // loop_body
      %s29 = ssub.s32 %s24, 1
      %s30 = ssub.s32 %s24, 2
      %s37 = sadd.s32 1, %s32
      %p38 = scmp.ge.s32.totalorder %s37, 2
      %s39 = scalar_select %p38, 0, %s37
      %s40 = sadd.s32 1, %s31
      %s41 = scalar_select %p38, %s40, %s31
      %p42 = scmp.ge.s32.totalorder %s41, 2
      %s43 = scalar_select %p42, 0, %s41
      %s44 = ssub.s32 %s31, %s43
      %p45 = scmp.eq.s32.totalorder %s44, 0
      %s47 = sadd.s32 %s46, 1
      %s48 = scalar_select %p45, %s46, %s47
      %p51 = pneg %p45
      %p52 = scmp.eq.s32.totalorder %s24, 3
      %p53 = por %p51, %p52
      %p54 = scmp.ne.s32.totalorder %s46, %s49
      %p55 = scmp.eq.s32.totalorder %s24, 0
      %p56 = por %p54, %p55
      %p57 = scmp.ne.s32.totalorder %s46, %s49
      %p58 = scmp.eq.s32.totalorder %s29, 3
      %p59 = por %p57, %p58
      %p60 = scmp.ne.s32.totalorder %s49, %s50
      %p61 = scmp.eq.s32.totalorder %s29, 0
      %p62 = por %p60, %p61
      %p63 = scmp.ne.s32.totalorder %s49, %s50
      %p64 = scmp.eq.s32.totalorder %s30, 3
      %p65 = por %p63, %p64
      %p67 = scmp.ne.s32.totalorder %s50, %s66
      %p68 = scmp.eq.s32.totalorder %s30, 0
      %p69 = por %p67, %p68
      %s70 = ssub.s32 %s31, %s43
      %p71 = scmp.eq.s32.totalorder %s70, 0
      %s73 = sadd.s32 %s72, 1
      %s74 = scalar_select %p71, %s72, %s73
      %p77 = pneg %p71
      %p78 = scmp.eq.s32.totalorder %s24, 3
      %p79 = por %p77, %p78
      %p80 = scmp.ne.s32.totalorder %s72, %s75
      %p81 = scmp.eq.s32.totalorder %s24, 0
      %p82 = por %p80, %p81
      %p83 = scmp.ne.s32.totalorder %s72, %s75
      %p84 = scmp.eq.s32.totalorder %s29, 3
      %p85 = por %p83, %p84
      %p86 = scmp.ne.s32.totalorder %s75, %s76
      %p87 = scmp.eq.s32.totalorder %s29, 0
      %p88 = por %p86, %p87
      %p89 = scmp.ne.s32.totalorder %s75, %s76
      %p90 = scmp.eq.s32.totalorder %s30, 3
      %p91 = por %p89, %p90
      %p93 = scmp.ne.s32.totalorder %s76, %s92
      %p94 = scmp.eq.s32.totalorder %s30, 0
      %p95 = por %p93, %p94
      %s96 = ssub.s32 %s32, %s39
      %p97 = scmp.eq.s32.totalorder %s96, 0
      %s99 = sadd.s32 %s98, 1
      %s100 = scalar_select %p97, %s98, %s99
      %p103 = pneg %p97
      %p104 = scmp.eq.s32.totalorder %s24, 3
      %p105 = por %p103, %p104
      %p106 = scmp.ne.s32.totalorder %s98, %s101
      %p107 = scmp.eq.s32.totalorder %s24, 0
      %p108 = por %p106, %p107
      %p109 = scmp.ne.s32.totalorder %s98, %s101
      %p110 = scmp.eq.s32.totalorder %s29, 3
      %p111 = por %p109, %p110
      %p112 = scmp.ne.s32.totalorder %s101, %s102
      %p113 = scmp.eq.s32.totalorder %s29, 0
      %p114 = por %p112, %p113
      %p115 = scmp.ne.s32.totalorder %s101, %s102
      %p116 = scmp.eq.s32.totalorder %s30, 3
      %p117 = por %p115, %p116
      %p119 = scmp.ne.s32.totalorder %s102, %s118
      %p120 = scmp.eq.s32.totalorder %s30, 0
      %p121 = por %p119, %p120
      %s122 = ssub.s32 %s32, %s39
      %p123 = scmp.eq.s32.totalorder %s122, 0
      %s125 = sadd.s32 %s124, 1
      %s126 = scalar_select %p123, %s124, %s125
      %p129 = pneg %p123
      %p130 = scmp.eq.s32.totalorder %s24, 3
      %p131 = por %p129, %p130
      %p132 = scmp.ne.s32.totalorder %s124, %s127
      %p133 = scmp.eq.s32.totalorder %s24, 0
      %p134 = por %p132, %p133
      %p135 = scmp.ne.s32.totalorder %s124, %s127
      %p136 = scmp.eq.s32.totalorder %s29, 3
      %p137 = por %p135, %p136
      %p138 = scmp.ne.s32.totalorder %s127, %s128
      %p139 = scmp.eq.s32.totalorder %s29, 0
      %p140 = por %p138, %p139
      %p141 = scmp.ne.s32.totalorder %s127, %s128
      %p142 = scmp.eq.s32.totalorder %s30, 3
      %p143 = por %p141, %p142
      %p145 = scmp.ne.s32.totalorder %s128, %s144
      %p146 = scmp.eq.s32.totalorder %s30, 0
      %p147 = por %p145, %p146
      %s148 = ssub.s32 %s32, %s39
      %p149 = scmp.eq.s32.totalorder %s148, 0
      %s151 = sadd.s32 %s150, 1
      %s152 = scalar_select %p149, %s150, %s151
      %p155 = pneg %p149
      %p156 = scmp.eq.s32.totalorder %s24, 3
      %p157 = por %p155, %p156
      %p158 = scmp.ne.s32.totalorder %s150, %s153
      %p159 = scmp.eq.s32.totalorder %s24, 0
      %p160 = por %p158, %p159
      %p161 = scmp.ne.s32.totalorder %s150, %s153
      %p162 = scmp.eq.s32.totalorder %s29, 3
      %p163 = por %p161, %p162
      %p164 = scmp.ne.s32.totalorder %s153, %s154
      %p165 = scmp.eq.s32.totalorder %s29, 0
      %p166 = por %p164, %p165
      %p167 = scmp.ne.s32.totalorder %s153, %s154
      %p168 = scmp.eq.s32.totalorder %s30, 3
      %p169 = por %p167, %p168
      %p171 = scmp.ne.s32.totalorder %s154, %s170
      %p172 = scmp.eq.s32.totalorder %s30, 0
      %p173 = por %p171, %p172
      %s174 = ssub.s32 %s32, %s39
      %p175 = scmp.eq.s32.totalorder %s174, 0
      %s177 = sadd.s32 %s176, 1
      %s178 = scalar_select %p175, %s176, %s177
      %p181 = pneg %p175
      %p182 = scmp.eq.s32.totalorder %s24, 3
      %p183 = por %p181, %p182
      %p184 = scmp.ne.s32.totalorder %s176, %s179
      %p185 = scmp.eq.s32.totalorder %s24, 0
      %p186 = por %p184, %p185
      %p187 = scmp.ne.s32.totalorder %s176, %s179
      %p188 = scmp.eq.s32.totalorder %s29, 3
      %p189 = por %p187, %p188
      %p190 = scmp.ne.s32.totalorder %s179, %s180
      %p191 = scmp.eq.s32.totalorder %s29, 0
      %p192 = por %p190, %p191
      %p193 = scmp.ne.s32.totalorder %s179, %s180
      %p194 = scmp.eq.s32.totalorder %s30, 3
      %p195 = por %p193, %p194
      %p197 = scmp.ne.s32.totalorder %s180, %s196
      %p198 = scmp.eq.s32.totalorder %s30, 0
      %p199 = por %p197, %p198
      %s200 = ssub.s32 %s32, %s39
      %p201 = scmp.eq.s32.totalorder %s200, 0
      %s203 = sadd.s32 %s202, 1
      %s204 = scalar_select %p201, %s202, %s203
      %p207 = pneg %p201
      %p208 = scmp.eq.s32.totalorder %s24, 3
      %p209 = por %p207, %p208
      %p210 = scmp.ne.s32.totalorder %s202, %s205
      %p211 = scmp.eq.s32.totalorder %s24, 0
      %p212 = por %p210, %p211
      %p213 = scmp.ne.s32.totalorder %s202, %s205
      %p214 = scmp.eq.s32.totalorder %s29, 3
      %p215 = por %p213, %p214
      %p216 = scmp.ne.s32.totalorder %s205, %s206
      %p217 = scmp.eq.s32.totalorder %s29, 0
      %p218 = por %p216, %p217
      %p219 = scmp.ne.s32.totalorder %s205, %s206
      %p220 = scmp.eq.s32.totalorder %s30, 3
      %p221 = por %p219, %p220
      %p223 = scmp.ne.s32.totalorder %s206, %s222
      %p224 = scmp.eq.s32.totalorder %s30, 0
      %p225 = por %p223, %p224
      %s226 = ssub.s32 %s32, %s39
      %p227 = scmp.eq.s32.totalorder %s226, 0
      %s229 = sadd.s32 %s228, 1
      %s230 = scalar_select %p227, %s228, %s229
      %p233 = pneg %p227
      %p234 = scmp.eq.s32.totalorder %s24, 3
      %p235 = por %p233, %p234
      %p236 = scmp.ne.s32.totalorder %s228, %s231
      %p237 = scmp.eq.s32.totalorder %s24, 0
      %p238 = por %p236, %p237
      %p239 = scmp.ne.s32.totalorder %s228, %s231
      %p240 = scmp.eq.s32.totalorder %s29, 3
      %p241 = por %p239, %p240
      %p242 = scmp.ne.s32.totalorder %s231, %s232
      %p243 = scmp.eq.s32.totalorder %s29, 0
      %p244 = por %p242, %p243
      %p245 = scmp.ne.s32.totalorder %s231, %s232
      %p246 = scmp.eq.s32.totalorder %s30, 3
      %p247 = por %p245, %p246
      %p249 = scmp.ne.s32.totalorder %s232, %s248
      %p250 = scmp.eq.s32.totalorder %s30, 0
      %p251 = por %p249, %p250
      %s252 = ssub.s32 %s32, %s39
      %p253 = scmp.eq.s32.totalorder %s252, 0
      %s255 = sadd.s32 %s254, 1
      %s256 = scalar_select %p253, %s254, %s255
      %p259 = pneg %p253
      %p260 = scmp.eq.s32.totalorder %s24, 3
      %p261 = por %p259, %p260
      %p262 = scmp.ne.s32.totalorder %s254, %s257
      %p263 = scmp.eq.s32.totalorder %s24, 0
      %p264 = por %p262, %p263
      %p265 = scmp.ne.s32.totalorder %s254, %s257
      %p266 = scmp.eq.s32.totalorder %s29, 3
      %p267 = por %p265, %p266
      %p268 = scmp.ne.s32.totalorder %s257, %s258
      %p269 = scmp.eq.s32.totalorder %s29, 0
      %p270 = por %p268, %p269
      %p271 = scmp.ne.s32.totalorder %s257, %s258
      %p272 = scmp.eq.s32.totalorder %s30, 3
      %p273 = por %p271, %p272
      %p275 = scmp.ne.s32.totalorder %s258, %s274
      %p276 = scmp.eq.s32.totalorder %s30, 0
      %p277 = por %p275, %p276
      %s278 = ssub.s32 %s31, %s43
      %p279 = scmp.eq.s32.totalorder %s278, 0
      %s281 = sadd.s32 %s280, 1
      %s282 = scalar_select %p279, %s280, %s281
      %p285 = pneg %p279
      %p286 = scmp.eq.s32.totalorder %s24, 3
      %p287 = por %p285, %p286
      %p288 = scmp.ne.s32.totalorder %s280, %s283
      %p289 = scmp.eq.s32.totalorder %s24, 0
      %p290 = por %p288, %p289
      %p291 = scmp.ne.s32.totalorder %s280, %s283
      %p292 = scmp.eq.s32.totalorder %s29, 3
      %p293 = por %p291, %p292
      %p294 = scmp.ne.s32.totalorder %s283, %s284
      %p295 = scmp.eq.s32.totalorder %s29, 0
      %p296 = por %p294, %p295
      %p297 = scmp.ne.s32.totalorder %s283, %s284
      %p298 = scmp.eq.s32.totalorder %s30, 3
      %p299 = por %p297, %p298
      %p301 = scmp.ne.s32.totalorder %s284, %s300
      %p302 = scmp.eq.s32.totalorder %s30, 0
      %p303 = por %p301, %p302
      %p304 = scmp.le.s32.totalorder 1, %s24
      %p305 = scmp.lt.s32.totalorder %s24, 5
      %p306 = pnand %p304, %p305
      %p307 = pneg %p306
      // Predicated region
      $region9: #{tpu_custom_call.1} parent=5 // pred_check
        _
      $region10: #{tpu_custom_call.1} parent=5 // pred_check_branch
        %309 = sbr.rel (%p306) target = $region12
      $region11: #{tpu_custom_call.1} parent=5 // pred_region
        %s310 = ssub.s32 %s24, 1
      $region12: #{tpu_custom_call.1} parent=5 // pred_fallthru
        _
      %p311 = scmp.lt.s32.totalorder %s24, 4
      // Predicated region
      $region13: #{tpu_custom_call.1} parent=5 // pred_check
        %p312 = pneg %p311
      $region14: #{tpu_custom_call.1} parent=5 // pred_check_branch
        %314 = sbr.rel (%p312) target = $region16
      $region15: #{tpu_custom_call.1} parent=5 // pred_region
        // Predicated region
        $region17: #{tpu_custom_call.1} parent=15 // pred_check
          %p315 = pneg %p56
        $region18: #{tpu_custom_call.1} parent=15 // pred_check_branch
          %317 = sbr.rel (%p315) target = $region20
        $region19: #{tpu_custom_call.1} parent=15 // pred_region
          %s318 = sand.u32 %s46, 1
          %s319 = scalar_lea.sflag [#allocation4], %s318
          %s320 = sand.u32 %s46, 1
          %s321 = scalar_lea.vmem [#allocation3], %s320
          %s323 = ssub.s32 16, 16
          %324 = vsyncadd %s319, %s323
          %s325 = smul.addr %s31, 16
          %s326 = scalar_lea.hbm %s0, %s325
          %s328 = sshll.u32 %s321, 4
          %s329 = int_to_ptr.vmem [resolvable:$true] %s328
          %331 = dma.hbm_to_vmem [thread:$0]  %s326, 16, %s329, %s319
        $region20: #{tpu_custom_call.1} parent=15 // pred_fallthru
          _
        // Predicated region
        $region21: #{tpu_custom_call.1} parent=15 // pred_check
          %p332 = pneg %p82
        $region22: #{tpu_custom_call.1} parent=15 // pred_check_branch
          %334 = sbr.rel (%p332) target = $region24
        $region23: #{tpu_custom_call.1} parent=15 // pred_region
          %s335 = sand.u32 %s72, 1
          %s336 = scalar_lea.sflag [#allocation7], %s335
          %s337 = sand.u32 %s72, 1
          %s338 = smul.addr %s337, 8
          %s339 = scalar_lea.vmem [#allocation6], %s338
          %s341 = ssub.s32 128, 128
          %342 = vsyncadd %s336, %s341
          %s343 = smul.addr %s31, 128
          %s344 = scalar_lea.hbm %s1, %s343
          %s346 = sshll.u32 %s339, 4
          %s347 = int_to_ptr.vmem [resolvable:$true] %s346
          %349 = dma.hbm_to_vmem [thread:$0]  %s344, 128, %s347, %s336
        $region24: #{tpu_custom_call.1} parent=15 // pred_fallthru
          _
        // Predicated region
        $region25: #{tpu_custom_call.1} parent=15 // pred_check
          %p350 = pneg %p108
        $region26: #{tpu_custom_call.1} parent=15 // pred_check_branch
          %352 = sbr.rel (%p350) target = $region28
        $region27: #{tpu_custom_call.1} parent=15 // pred_region
          %p353 = scmp.lt.s32.totalorder %s32, 1
          %s354 = scalar_select %p353, %s32, 1
          %s355 = smul.addr %s354, 4
          %s356 = smul.addr %s355, 4
          %s357 = scalar_lea.vmem %s2, %s356
        $region28: #{tpu_custom_call.1} parent=15 // pred_fallthru
          _
        // Predicated region
        $region29: #{tpu_custom_call.1} parent=15 // pred_check
          %p358 = pneg %p134
        $region30: #{tpu_custom_call.1} parent=15 // pred_check_branch
          %360 = sbr.rel (%p358) target = $region32
        $region31: #{tpu_custom_call.1} parent=15 // pred_region
          %p361 = scmp.lt.s32.totalorder %s32, 1
          %s362 = scalar_select %p361, %s32, 1
          %s363 = scalar_lea.vmem %s3, %s362
        $region32: #{tpu_custom_call.1} parent=15 // pred_fallthru
          _
        // Predicated region
        $region33: #{tpu_custom_call.1} parent=15 // pred_check
          %p364 = pneg %p160
        $region34: #{tpu_custom_call.1} parent=15 // pred_check_branch
          %366 = sbr.rel (%p364) target = $region36
        $region35: #{tpu_custom_call.1} parent=15 // pred_region
          %p367 = scmp.lt.s32.totalorder %s32, 1
          %s368 = scalar_select %p367, %s32, 1
          %s369 = smul.addr %s368, 4
          %s370 = smul.addr %s369, 4
          %s371 = scalar_lea.vmem %s4, %s370
        $region36: #{tpu_custom_call.1} parent=15 // pred_fallthru
          _
        // Predicated region
        $region37: #{tpu_custom_call.1} parent=15 // pred_check
          %p372 = pneg %p186
        $region38: #{tpu_custom_call.1} parent=15 // pred_check_branch
          %374 = sbr.rel (%p372) target = $region40
        $region39: #{tpu_custom_call.1} parent=15 // pred_region
          %p375 = scmp.lt.s32.totalorder %s32, 1
          %s376 = scalar_select %p375, %s32, 1
          %s377 = smul.addr %s376, 8
          %s378 = scalar_lea.vmem %s5, %s377
        $region40: #{tpu_custom_call.1} parent=15 // pred_fallthru
          _
        // Predicated region
        $region41: #{tpu_custom_call.1} parent=15 // pred_check
          %p379 = pneg %p212
        $region42: #{tpu_custom_call.1} parent=15 // pred_check_branch
          %381 = sbr.rel (%p379) target = $region44
        $region43: #{tpu_custom_call.1} parent=15 // pred_region
          %p382 = scmp.lt.s32.totalorder %s32, 1
          %s383 = scalar_select %p382, %s32, 1
          %s384 = smul.addr %s383, 4
          %s385 = smul.addr %s384, 4
          %s386 = scalar_lea.vmem %s6, %s385
        $region44: #{tpu_custom_call.1} parent=15 // pred_fallthru
          _
        // Predicated region
        $region45: #{tpu_custom_call.1} parent=15 // pred_check
          %p387 = pneg %p238
        $region46: #{tpu_custom_call.1} parent=15 // pred_check_branch
          %389 = sbr.rel (%p387) target = $region48
        $region47: #{tpu_custom_call.1} parent=15 // pred_region
          %p390 = scmp.lt.s32.totalorder %s32, 1
          %s391 = scalar_select %p390, %s32, 1
          %s392 = scalar_lea.vmem %s7, %s391
        $region48: #{tpu_custom_call.1} parent=15 // pred_fallthru
          _
        // Predicated region
        $region49: #{tpu_custom_call.1} parent=15 // pred_check
          %p393 = pneg %p264
        $region50: #{tpu_custom_call.1} parent=15 // pred_check_branch
          %395 = sbr.rel (%p393) target = $region52
        $region51: #{tpu_custom_call.1} parent=15 // pred_region
          %p396 = scmp.lt.s32.totalorder %s32, 1
          %s397 = scalar_select %p396, %s32, 1
          %s398 = smul.addr %s397, 8
          %s399 = smul.addr %s398, 4
          %s400 = scalar_lea.vmem %s8, %s399
        $region52: #{tpu_custom_call.1} parent=15 // pred_fallthru
          _
      $region16: #{tpu_custom_call.1} parent=5 // pred_fallthru
        _
      %p401 = scmp.le.s32.totalorder 1, %s24
      %p402 = scmp.lt.s32.totalorder %s24, 5
      %p403 = pnand %p401, %p402
      %p404 = pneg %p403
      // Predicated region
      $region53: #{tpu_custom_call.1} parent=5 // pred_check
        _
      $region54: #{tpu_custom_call.1} parent=5 // pred_check_branch
        %406 = sbr.rel (%p403) target = $region56
      $region55: #{tpu_custom_call.1} parent=5 // pred_region
        %s407 = ssub.s32 %s24, 1
        %s408 = sand.u32 %s49, 1
        %s409 = scalar_lea.sflag [#allocation4], %s408
        %s410 = sand.u32 %s49, 1
        %s411 = scalar_lea.vmem [#allocation3], %s410
        // Predicated region
        $region57: #{tpu_custom_call.1} parent=55 // pred_check
          %p412 = pneg %p62
        $region58: #{tpu_custom_call.1} parent=55 // pred_check_branch
          %414 = sbr.rel (%p412) target = $region60
        $region59: #{tpu_custom_call.1} parent=55 // pred_region
          %415 = dma.done %s409, 16
        $region60: #{tpu_custom_call.1} parent=55 // pred_fallthru
          _
        %s416 = sand.u32 %s75, 1
        %s417 = scalar_lea.sflag [#allocation7], %s416
        %s418 = sand.u32 %s75, 1
        %s419 = smul.addr %s418, 8
        %s420 = scalar_lea.vmem [#allocation6], %s419
        // Predicated region
        $region61: #{tpu_custom_call.1} parent=55 // pred_check
          %p421 = pneg %p88
        $region62: #{tpu_custom_call.1} parent=55 // pred_check_branch
          %423 = sbr.rel (%p421) target = $region64
        $region63: #{tpu_custom_call.1} parent=55 // pred_region
          %424 = dma.done %s417, 128
        $region64: #{tpu_custom_call.1} parent=55 // pred_fallthru
          _
        %s425 = sand.u32 %s49, 1
        %s426 = scalar_lea.sflag [#allocation4], %s425
        %s427 = sand.u32 %s49, 1
        %s428 = scalar_lea.vmem [#allocation3], %s427
        %p429 = pneg %p62
        %p430 = pneg %p59
        %s431 = sand.u32 %s75, 1
        %s432 = scalar_lea.sflag [#allocation7], %s431
        %s433 = sand.u32 %s75, 1
        %s434 = smul.addr %s433, 8
        %s435 = scalar_lea.vmem [#allocation6], %s434
        %p436 = pneg %p88
        %p437 = pneg %p85
        %p438 = scmp.lt.s32.totalorder %s34, 1
        %s439 = scalar_select %p438, %s34, 1
        %s440 = smul.addr %s439, 4
        %s441 = smul.addr %s440, 4
        %s442 = scalar_lea.vmem %s2, %s441
        %p443 = pneg %p114
        %p444 = pneg %p111
        %p445 = scmp.lt.s32.totalorder %s34, 1
        %s446 = scalar_select %p445, %s34, 1
        %s447 = scalar_lea.vmem %s3, %s446
        %p448 = pneg %p140
        %p449 = pneg %p137
        %p450 = scmp.lt.s32.totalorder %s34, 1
        %s451 = scalar_select %p450, %s34, 1
        %s452 = smul.addr %s451, 4
        %s453 = smul.addr %s452, 4
        %s454 = scalar_lea.vmem %s4, %s453
        %p455 = pneg %p166
        %p456 = pneg %p163
        %p457 = scmp.lt.s32.totalorder %s34, 1
        %s458 = scalar_select %p457, %s34, 1
        %s459 = smul.addr %s458, 8
        %s460 = scalar_lea.vmem %s5, %s459
        %p461 = pneg %p192
        %p462 = pneg %p189
        %p463 = scmp.lt.s32.totalorder %s34, 1
        %s464 = scalar_select %p463, %s34, 1
        %s465 = smul.addr %s464, 4
        %s466 = smul.addr %s465, 4
        %s467 = scalar_lea.vmem %s6, %s466
        %p468 = pneg %p218
        %p469 = pneg %p215
        %p470 = scmp.lt.s32.totalorder %s34, 1
        %s471 = scalar_select %p470, %s34, 1
        %s472 = scalar_lea.vmem %s7, %s471
        %p473 = pneg %p244
        %p474 = pneg %p241
        %p475 = scmp.lt.s32.totalorder %s34, 1
        %s476 = scalar_select %p475, %s34, 1
        %s477 = smul.addr %s476, 8
        %s478 = smul.addr %s477, 4
        %s479 = scalar_lea.vmem %s8, %s478
        %p480 = pneg %p270
        %p481 = pneg %p267
        %p482 = pneg %p296
        %p483 = pneg %p293
        %s484 = sand.u32 %s283, 1
        %s485 = scalar_lea.sflag [#allocation5], %s484
        %s486 = sand.u32 %s283, 1
        %s487 = smul.addr %s486, 8
        %s488 = scalar_lea.vmem [#allocation8], %s487
        %p489 = scmp.lt.s32.totalorder %s34, 1
        %s490 = scalar_select %p489, %s34, 1
        %s491 = smul.addr %s490, 4
        %s492 = smul.addr %s491, 4
        %s493 = scalar_lea.vmem %s2, %s492
        %p494 = scmp.lt.s32.totalorder %s34, 1
        %s495 = scalar_select %p494, %s34, 1
        %s496 = scalar_lea.vmem %s3, %s495
        %p497 = scmp.lt.s32.totalorder %s34, 1
        %s498 = scalar_select %p497, %s34, 1
        %s499 = smul.addr %s498, 4
        %s500 = smul.addr %s499, 4
        %s501 = scalar_lea.vmem %s4, %s500
        %p502 = scmp.lt.s32.totalorder %s34, 1
        %s503 = scalar_select %p502, %s34, 1
        %s504 = smul.addr %s503, 8
        %s505 = scalar_lea.vmem %s5, %s504
        %p506 = scmp.lt.s32.totalorder %s34, 1
        %s507 = scalar_select %p506, %s34, 1
        %s508 = smul.addr %s507, 4
        %s509 = smul.addr %s508, 4
        %s510 = scalar_lea.vmem %s6, %s509
        %p511 = scmp.lt.s32.totalorder %s34, 1
        %s512 = scalar_select %p511, %s34, 1
        %s513 = scalar_lea.vmem %s7, %s512
        %p514 = scmp.lt.s32.totalorder %s34, 1
        %s515 = scalar_select %p514, %s34, 1
        %s516 = smul.addr %s515, 8
        %s517 = smul.addr %s516, 4
        %s518 = scalar_lea.vmem %s8, %s517
        %p520 = scmp.eq.s32.totalorder %s34, 0
        // Predicated region
        $region65: #{tpu_custom_call.1} parent=55 // pred_check
          %p521 = pneg %p520
        $region66: #{tpu_custom_call.1} parent=55 // pred_check_branch
          %523 = sbr.rel (%p521) target = $region68
        $region67: #{tpu_custom_call.1} parent=55 // pred_region
          %v524 = vld [vmem:[%s420] sm:$0xff]
          %vm525 = vcmask 261120
          %526 = vst.msk [vmem:[%s488] sm:$0xff] %vm525, %v524
        $region68: #{tpu_custom_call.1} parent=55 // pred_fallthru
          _
        %v527 = vld [vmem:[%s488] sm:$0xff]
        %v528 = vpack.c.bf16 %v527, %v527
        %v529 = vld [vmem:[%s493] sm:$0xf]
        %v530 = vld [vmem:[%s493 + $0x4] sm:$0xf]
        %v531 = vld [vmem:[%s493 + $0x8] sm:$0xf]
        %v532 = vld [vmem:[%s493 + $0xc] sm:$0xf]
        %v533 = vld [vmem:[%s496] sm:$0x1]
        %v535 = vlaneseq
        %v536 = vshrl.u32 %v535, 7
        %v537 = vsub.s32 0, %v536
        %v538 = vrot.slane %v533, %v537
        %v544 = vunpack.c.l.b16 %v529
        %v545 = vunpack.c.l.b16 %v530
        %v546 = vunpack.c.l.b16 %v531
        %v547 = vunpack.c.l.b16 %v532
        %v548 = vpack.c.b16 %v545, %v544
        %v549 = vpack.c.b16 %v547, %v546
        %vm552 = vcmask 261120
        %v554 = vsel %vm552, %v528, 0
        %556 = vmatprep.subr.bf16.mxu0 0
        %557 = vmatpush1.bf16.msra.mxu0 %v548
        %558 = vmatprep.subr.bf16.mxu0 0
        %559 = vmatpush1.bf16.msra.mxu0 %v549
        %560 = vmatprep.subr.bf16.mxu0 0
        %561 = vmatpush1.bf16.msra.mxu0 0
        %562 = vmatprep.subr.bf16.mxu0 0
        %563 = vmatpush1.bf16.msra.mxu0 0
        %564 = vmatprep.subr.bf16.mxu0 0
        %565 = vmatpush1.bf16.msra.mxu0 0
        %566 = vmatprep.subr.bf16.mxu0 0
        %567 = vmatpush1.bf16.msra.mxu0 0
        %568 = vmatprep.subr.bf16.mxu0 0
        %569 = vmatpush1.bf16.msra.mxu0 0
        %570 = vmatprep.subr.bf16.mxu0 0
        %571 = vmatpush1.bf16.msra.mxu0 0
        %572 = vmatprep.subr.bf16.mxu0 0
        %573 = vmatpush1.bf16.msra.mxu0 0
        %574 = vmatprep.subr.bf16.mxu0 0
        %575 = vmatpush1.bf16.msra.mxu0 0
        %576 = vmatprep.subr.bf16.mxu0 0
        %577 = vmatpush1.bf16.msra.mxu0 0
        %578 = vmatprep.subr.bf16.mxu0 0
        %579 = vmatpush1.bf16.msra.mxu0 0
        %580 = vmatprep.subr.bf16.mxu0 0
        %581 = vmatpush1.bf16.msra.mxu0 0
        %582 = vmatprep.subr.bf16.mxu0 0
        %583 = vmatpush1.bf16.msra.mxu0 0
        %584 = vmatprep.subr.bf16.mxu0 0
        %585 = vmatpush1.bf16.msra.mxu0 0
        %586 = vmatprep.subr.bf16.mxu0 0
        %587 = vmatpush1.bf16.msra.mxu0 0
        %588 = vmatprep.mubr.bf16.mxu0 0
        %589 = vmatmul.mubr.bf16.gmra.mrb[0].mxu0 %v554
        %v590 = vpop.f32.mrb[0].mxu0
        %v591 = vadd.f32 %v538, %v590
        %v592 = vpop.f32.mrb[0].mxu0
        %v593 = vpop.f32.mrb[0].mxu0
        %v594 = vpop.f32.mrb[0].mxu0
        %595 = vdwg.mxu0
        %v596 = vpack.c.bf16 %v591, %v591
        %v597 = vld [vmem:[%s505] sm:$0x1]
        %v598 = vld [vmem:[%s505 + $0x1] sm:$0x1]
        %v599 = vld [vmem:[%s505 + $0x2] sm:$0x1]
        %v600 = vld [vmem:[%s505 + $0x3] sm:$0x1]
        %v601 = vld [vmem:[%s505 + $0x4] sm:$0x1]
        %v602 = vld [vmem:[%s505 + $0x5] sm:$0x1]
        %v603 = vld [vmem:[%s411] sm:$0x1]
        %vm604 = vcmp.gt.s32.totalorder %v603, 0
        %606 = vrot.lane.b32.xlu0 %v596, 96
        %v607 = vpop.permute.xlu0 %606
        %vm608 = vcmask 64512
        %v610 = vsel %vm608, %v596, 0
        %v613 = vsel %vm608, %v607, 0
        %615 = vmatprep.subr.bf16.mxu0 0
        %616 = vmatpush1.bf16.xpose.msra.mxu0 %v613
        %617 = vmatprep.subr.bf16.mxu0 0
        %618 = vmatpush1.bf16.xpose.msra.mxu0 0
        %619 = vmatprep.subr.bf16.mxu0 0
        %620 = vmatpush1.bf16.xpose.msra.mxu0 0
        %621 = vmatprep.subr.bf16.mxu0 0
        %622 = vmatpush1.bf16.xpose.msra.mxu0 0
        %623 = vmatprep.subr.bf16.mxu0 0
        %624 = vmatpush1.bf16.xpose.msra.mxu0 0
        %625 = vmatprep.subr.bf16.mxu0 0
        %626 = vmatpush1.bf16.xpose.msra.mxu0 0
        %627 = vmatprep.subr.bf16.mxu0 0
        %628 = vmatpush1.bf16.xpose.msra.mxu0 0
        %629 = vmatprep.subr.bf16.mxu0 0
        %630 = vmatpush1.bf16.xpose.msra.mxu0 0
        %631 = vmatprep.subr.bf16.mxu0 0
        %632 = vmatpush1.bf16.xpose.msra.mxu0 0
        %633 = vmatprep.subr.bf16.mxu0 0
        %634 = vmatpush1.bf16.xpose.msra.mxu0 0
        %635 = vmatprep.subr.bf16.mxu0 0
        %636 = vmatpush1.bf16.xpose.msra.mxu0 0
        %637 = vmatprep.subr.bf16.mxu0 0
        %638 = vmatpush1.bf16.xpose.msra.mxu0 0
        %639 = vmatprep.subr.bf16.mxu0 0
        %640 = vmatpush1.bf16.xpose.msra.mxu0 0
        %641 = vmatprep.subr.bf16.mxu0 0
        %642 = vmatpush1.bf16.xpose.msra.mxu0 0
        %643 = vmatprep.subr.bf16.mxu0 0
        %644 = vmatpush1.bf16.xpose.msra.mxu0 0
        %645 = vmatprep.subr.bf16.mxu0 0
        %646 = vmatpush1.bf16.xpose.msra.mxu0 0
        %647 = vmatprep.mubr.bf16.mxu0 0
        %648 = vmatmul.mubr.bf16.gmra.mrb[0].mxu0 %v610
        %v649 = vpop.f32.mrb[0].mxu0
        %v650 = vadd.f32 0.0, %v649
        %v651 = vpop.f32.mrb[0].mxu0
        %v652 = vpop.f32.mrb[0].mxu0
        %v653 = vpop.f32.mrb[0].mxu0
        %654 = vdwg.mxu0
        %v655 = vsel %vm604, 1, 0
        %v656 = vlaneseq
        %v657 = vshrl.u32 %v656, 7
        %v658 = vsub.s32 0, %v657
        %v659 = vrot.slane %v655, %v658
        %vm660 = vcmp.eq.s32.totalorder %v659, 1
        %v661 = vsel %vm660, %v650, -1000000.0
        %v662 = vsel %vm608, %v661, -inf
        %663 = vmax.xlane.f32.xlu0 %v662
        %v664 = vpop.xlane.xlu0 %663
        %v665 = vsub.f32 %v661, %v664
        %v666 = vmul.f32 %v665, 1.442695
        %v667 = vpow.pop %v666
        %v668 = vsel %vm608, %v667, 0.0
        %669 = vadd.xlane.f32.xlu0 %v668
        %v670 = vpop.xlane.xlu0 %669
        %v671 = vrcp.pop %v670
        %v672 = vmul.f32 %v667, %v671
        %v673 = vpack.c.bf16 %v672, %v672
        %674 = vrot.lane.b32.xlu0 %v596, 64
        %v675 = vpop.permute.xlu0 %674
        %v677 = vsel %vm608, %v673, 0
        %vm679 = vcmask 1043456
        %v681 = vsel %vm679, %v675, 0
        %683 = vmatprep.subr.bf16.mxu0 0
        %684 = vmatpush1.bf16.msra.mxu0 %v681
        %685 = vmatprep.subr.bf16.mxu0 0
        %686 = vmatpush1.bf16.msra.mxu0 0
        %687 = vmatprep.subr.bf16.mxu0 0
        %688 = vmatpush1.bf16.msra.mxu0 0
        %689 = vmatprep.subr.bf16.mxu0 0
        %690 = vmatpush1.bf16.msra.mxu0 0
        %691 = vmatprep.subr.bf16.mxu0 0
        %692 = vmatpush1.bf16.msra.mxu0 0
        %693 = vmatprep.subr.bf16.mxu0 0
        %694 = vmatpush1.bf16.msra.mxu0 0
        %695 = vmatprep.subr.bf16.mxu0 0
        %696 = vmatpush1.bf16.msra.mxu0 0
        %697 = vmatprep.subr.bf16.mxu0 0
        %698 = vmatpush1.bf16.msra.mxu0 0
        %699 = vmatprep.subr.bf16.mxu0 0
        %700 = vmatpush1.bf16.msra.mxu0 0
        %701 = vmatprep.subr.bf16.mxu0 0
        %702 = vmatpush1.bf16.msra.mxu0 0
        %703 = vmatprep.subr.bf16.mxu0 0
        %704 = vmatpush1.bf16.msra.mxu0 0
        %705 = vmatprep.subr.bf16.mxu0 0
        %706 = vmatpush1.bf16.msra.mxu0 0
        %707 = vmatprep.subr.bf16.mxu0 0
        %708 = vmatpush1.bf16.msra.mxu0 0
        %709 = vmatprep.subr.bf16.mxu0 0
        %710 = vmatpush1.bf16.msra.mxu0 0
        %711 = vmatprep.subr.bf16.mxu0 0
        %712 = vmatpush1.bf16.msra.mxu0 0
        %713 = vmatprep.subr.bf16.mxu0 0
        %714 = vmatpush1.bf16.msra.mxu0 0
        %715 = vmatprep.mubr.bf16.mxu0 0
        %716 = vmatmul.mubr.bf16.gmra.mrb[0].mxu0 %v677
        %v717 = vpop.f32.mrb[0].mxu0
        %v718 = vadd.f32 0.0, %v717
        %v719 = vpop.f32.mrb[0].mxu0
        %v720 = vpop.f32.mrb[0].mxu0
        %v721 = vpop.f32.mrb[0].mxu0
        %722 = vdwg.mxu0
        %v723 = vpack.c.bf16 %v718, %v718
        %vm724 = vcmask 60416
        %725 = vst.msk [vmem:[#allocation2] sm:$0xf] %vm724, %v723
        %726 = vrot.lane.b32.xlu0 %v596, 120
        %v727 = vpop.permute.xlu0 %726
        %728 = vrot.lane.b32.xlu0 %v596, 88
        %v729 = vpop.permute.xlu0 %728
        %v731 = vsel %vm608, %v727, 0
        %v734 = vsel %vm608, %v729, 0
        %736 = vmatprep.subr.bf16.mxu0 0
        %737 = vmatpush1.bf16.xpose.msra.mxu0 %v734
        %738 = vmatprep.subr.bf16.mxu0 0
        %739 = vmatpush1.bf16.xpose.msra.mxu0 0
        %740 = vmatprep.subr.bf16.mxu0 0
        %741 = vmatpush1.bf16.xpose.msra.mxu0 0
        %742 = vmatprep.subr.bf16.mxu0 0
        %743 = vmatpush1.bf16.xpose.msra.mxu0 0
        %744 = vmatprep.subr.bf16.mxu0 0
        %745 = vmatpush1.bf16.xpose.msra.mxu0 0
        %746 = vmatprep.subr.bf16.mxu0 0
        %747 = vmatpush1.bf16.xpose.msra.mxu0 0
        %748 = vmatprep.subr.bf16.mxu0 0
        %749 = vmatpush1.bf16.xpose.msra.mxu0 0
        %750 = vmatprep.subr.bf16.mxu0 0
        %751 = vmatpush1.bf16.xpose.msra.mxu0 0
        %752 = vmatprep.subr.bf16.mxu0 0
        %753 = vmatpush1.bf16.xpose.msra.mxu0 0
        %754 = vmatprep.subr.bf16.mxu0 0
        %755 = vmatpush1.bf16.xpose.msra.mxu0 0
        %756 = vmatprep.subr.bf16.mxu0 0
        %757 = vmatpush1.bf16.xpose.msra.mxu0 0
        %758 = vmatprep.subr.bf16.mxu0 0
        %759 = vmatpush1.bf16.xpose.msra.mxu0 0
        %760 = vmatprep.subr.bf16.mxu0 0
        %761 = vmatpush1.bf16.xpose.msra.mxu0 0
        %762 = vmatprep.subr.bf16.mxu0 0
        %763 = vmatpush1.bf16.xpose.msra.mxu0 0
        %764 = vmatprep.subr.bf16.mxu0 0
        %765 = vmatpush1.bf16.xpose.msra.mxu0 0
        %766 = vmatprep.subr.bf16.mxu0 0
        %767 = vmatpush1.bf16.xpose.msra.mxu0 0
        %768 = vmatprep.mubr.bf16.mxu0 0
        %769 = vmatmul.mubr.bf16.gmra.mrb[0].mxu0 %v731
        %v770 = vpop.f32.mrb[0].mxu0
        %v771 = vadd.f32 0.0, %v770
        %v772 = vpop.f32.mrb[0].mxu0
        %v773 = vpop.f32.mrb[0].mxu0
        %v774 = vpop.f32.mrb[0].mxu0
        %775 = vdwg.mxu0
        %v776 = vsel %vm660, %v771, -1000000.0
        %v777 = vsel %vm608, %v776, -inf
        %778 = vmax.xlane.f32.xlu0 %v777
        %v779 = vpop.xlane.xlu0 %778
        %v780 = vsub.f32 %v776, %v779
        %v781 = vmul.f32 %v780, 1.442695
        %v782 = vpow.pop %v781
        %v783 = vsel %vm608, %v782, 0.0
        %784 = vadd.xlane.f32.xlu0 %v783
        %v785 = vpop.xlane.xlu0 %784
        %v786 = vrcp.pop %v785
        %v787 = vmul.f32 %v782, %v786
        %v788 = vpack.c.bf16 %v787, %v787
        %789 = vrot.lane.b32.xlu0 %v596, 56
        %v790 = vpop.permute.xlu0 %789
        %v792 = vsel %vm608, %v788, 0
        %v795 = vsel %vm679, %v790, 0
        %797 = vmatprep.subr.bf16.mxu0 0
        %798 = vmatpush1.bf16.msra.mxu0 %v795
        %799 = vmatprep.subr.bf16.mxu0 0
        %800 = vmatpush1.bf16.msra.mxu0 0
        %801 = vmatprep.subr.bf16.mxu0 0
        %802 = vmatpush1.bf16.msra.mxu0 0
        %803 = vmatprep.subr.bf16.mxu0 0
        %804 = vmatpush1.bf16.msra.mxu0 0
        %805 = vmatprep.subr.bf16.mxu0 0
        %806 = vmatpush1.bf16.msra.mxu0 0
        %807 = vmatprep.subr.bf16.mxu0 0
        %808 = vmatpush1.bf16.msra.mxu0 0
        %809 = vmatprep.subr.bf16.mxu0 0
        %810 = vmatpush1.bf16.msra.mxu0 0
        %811 = vmatprep.subr.bf16.mxu0 0
        %812 = vmatpush1.bf16.msra.mxu0 0
        %813 = vmatprep.subr.bf16.mxu0 0
        %814 = vmatpush1.bf16.msra.mxu0 0
        %815 = vmatprep.subr.bf16.mxu0 0
        %816 = vmatpush1.bf16.msra.mxu0 0
        %817 = vmatprep.subr.bf16.mxu0 0
        %818 = vmatpush1.bf16.msra.mxu0 0
        %819 = vmatprep.subr.bf16.mxu0 0
        %820 = vmatpush1.bf16.msra.mxu0 0
        %821 = vmatprep.subr.bf16.mxu0 0
        %822 = vmatpush1.bf16.msra.mxu0 0
        %823 = vmatprep.subr.bf16.mxu0 0
        %824 = vmatpush1.bf16.msra.mxu0 0
        %825 = vmatprep.subr.bf16.mxu0 0
        %826 = vmatpush1.bf16.msra.mxu0 0
        %827 = vmatprep.subr.bf16.mxu0 0
        %828 = vmatpush1.bf16.msra.mxu0 0
        %829 = vmatprep.mubr.bf16.mxu0 0
        %830 = vmatmul.mubr.bf16.gmra.mrb[0].mxu0 %v792
        %v831 = vpop.f32.mrb[0].mxu0
        %v832 = vadd.f32 0.0, %v831
        %v833 = vpop.f32.mrb[0].mxu0
        %v834 = vpop.f32.mrb[0].mxu0
        %v835 = vpop.f32.mrb[0].mxu0
        %836 = vdwg.mxu0
        %v837 = vpack.c.bf16 %v832, %v832
        %v839 = vunpack.c.l.b16 %v837
        %v840 = vpack.c.b16 %v839, %v839
        %841 = vrot.lane.b32.xlu0 %v840, 8
        %v842 = vpop.permute.xlu0 %841
        %vm844 = vcmask 126016
        %845 = vst.msk [vmem:[#allocation2] sm:$0xf] %vm844, %v842
        %846 = vrot.lane.b32.xlu0 %v596, 112
        %v847 = vpop.permute.xlu0 %846
        %848 = vrot.lane.b32.xlu0 %v596, 80
        %v849 = vpop.permute.xlu0 %848
        %v851 = vsel %vm608, %v847, 0
        %v854 = vsel %vm608, %v849, 0
        %856 = vmatprep.subr.bf16.mxu0 0
        %857 = vmatpush1.bf16.xpose.msra.mxu0 %v854
        %858 = vmatprep.subr.bf16.mxu0 0
        %859 = vmatpush1.bf16.xpose.msra.mxu0 0
        %860 = vmatprep.subr.bf16.mxu0 0
        %861 = vmatpush1.bf16.xpose.msra.mxu0 0
        %862 = vmatprep.subr.bf16.mxu0 0
        %863 = vmatpush1.bf16.xpose.msra.mxu0 0
        %864 = vmatprep.subr.bf16.mxu0 0
        %865 = vmatpush1.bf16.xpose.msra.mxu0 0
        %866 = vmatprep.subr.bf16.mxu0 0
        %867 = vmatpush1.bf16.xpose.msra.mxu0 0
        %868 = vmatprep.subr.bf16.mxu0 0
        %869 = vmatpush1.bf16.xpose.msra.mxu0 0
        %870 = vmatprep.subr.bf16.mxu0 0
        %871 = vmatpush1.bf16.xpose.msra.mxu0 0
        %872 = vmatprep.subr.bf16.mxu0 0
        %873 = vmatpush1.bf16.xpose.msra.mxu0 0
        %874 = vmatprep.subr.bf16.mxu0 0
        %875 = vmatpush1.bf16.xpose.msra.mxu0 0
        %876 = vmatprep.subr.bf16.mxu0 0
        %877 = vmatpush1.bf16.xpose.msra.mxu0 0
        %878 = vmatprep.subr.bf16.mxu0 0
        %879 = vmatpush1.bf16.xpose.msra.mxu0 0
        %880 = vmatprep.subr.bf16.mxu0 0
        %881 = vmatpush1.bf16.xpose.msra.mxu0 0
        %882 = vmatprep.subr.bf16.mxu0 0
        %883 = vmatpush1.bf16.xpose.msra.mxu0 0
        %884 = vmatprep.subr.bf16.mxu0 0
        %885 = vmatpush1.bf16.xpose.msra.mxu0 0
        %886 = vmatprep.subr.bf16.mxu0 0
        %887 = vmatpush1.bf16.xpose.msra.mxu0 0
        %888 = vmatprep.mubr.bf16.mxu0 0
        %889 = vmatmul.mubr.bf16.gmra.mrb[0].mxu0 %v851
        %v890 = vpop.f32.mrb[0].mxu0
        %v891 = vadd.f32 0.0, %v890
        %v892 = vpop.f32.mrb[0].mxu0
        %v893 = vpop.f32.mrb[0].mxu0
        %v894 = vpop.f32.mrb[0].mxu0
        %895 = vdwg.mxu0
        %v896 = vsel %vm660, %v891, -1000000.0
        %v897 = vsel %vm608, %v896, -inf
        %898 = vmax.xlane.f32.xlu0 %v897
        %v899 = vpop.xlane.xlu0 %898
        %v900 = vsub.f32 %v896, %v899
        %v901 = vmul.f32 %v900, 1.442695
        %v902 = vpow.pop %v901
        %v903 = vsel %vm608, %v902, 0.0
        %904 = vadd.xlane.f32.xlu0 %v903
        %v905 = vpop.xlane.xlu0 %904
        %v906 = vrcp.pop %v905
        %v907 = vmul.f32 %v902, %v906
        %v908 = vpack.c.bf16 %v907, %v907
        %909 = vrot.lane.b32.xlu0 %v596, 48
        %v910 = vpop.permute.xlu0 %909
        %v912 = vsel %vm608, %v908, 0
        %v915 = vsel %vm679, %v910, 0
        %917 = vmatprep.subr.bf16.mxu0 0
        %918 = vmatpush1.bf16.msra.mxu0 %v915
        %919 = vmatprep.subr.bf16.mxu0 0
        %920 = vmatpush1.bf16.msra.mxu0 0
        %921 = vmatprep.subr.bf16.mxu0 0
        %922 = vmatpush1.bf16.msra.mxu0 0
        %923 = vmatprep.subr.bf16.mxu0 0
        %924 = vmatpush1.bf16.msra.mxu0 0
        %925 = vmatprep.subr.bf16.mxu0 0
        %926 = vmatpush1.bf16.msra.mxu0 0
        %927 = vmatprep.subr.bf16.mxu0 0
        %928 = vmatpush1.bf16.msra.mxu0 0
        %929 = vmatprep.subr.bf16.mxu0 0
        %930 = vmatpush1.bf16.msra.mxu0 0
        %931 = vmatprep.subr.bf16.mxu0 0
        %932 = vmatpush1.bf16.msra.mxu0 0
        %933 = vmatprep.subr.bf16.mxu0 0
        %934 = vmatpush1.bf16.msra.mxu0 0
        %935 = vmatprep.subr.bf16.mxu0 0
        %936 = vmatpush1.bf16.msra.mxu0 0
        %937 = vmatprep.subr.bf16.mxu0 0
        %938 = vmatpush1.bf16.msra.mxu0 0
        %939 = vmatprep.subr.bf16.mxu0 0
        %940 = vmatpush1.bf16.msra.mxu0 0
        %941 = vmatprep.subr.bf16.mxu0 0
        %942 = vmatpush1.bf16.msra.mxu0 0
        %943 = vmatprep.subr.bf16.mxu0 0
        %944 = vmatpush1.bf16.msra.mxu0 0
        %945 = vmatprep.subr.bf16.mxu0 0
        %946 = vmatpush1.bf16.msra.mxu0 0
        %947 = vmatprep.subr.bf16.mxu0 0
        %948 = vmatpush1.bf16.msra.mxu0 0
        %949 = vmatprep.mubr.bf16.mxu0 0
        %950 = vmatmul.mubr.bf16.gmra.mrb[0].mxu0 %v912
        %v951 = vpop.f32.mrb[0].mxu0
        %v952 = vadd.f32 0.0, %v951
        %v953 = vpop.f32.mrb[0].mxu0
        %v954 = vpop.f32.mrb[0].mxu0
        %v955 = vpop.f32.mrb[0].mxu0
        %956 = vdwg.mxu0
        %v957 = vpack.c.bf16 %v952, %v952
        %v959 = vunpack.c.l.b16 %v957
        %v960 = vpack.c.b16 %v959, %v959
        %961 = vrot.lane.b32.xlu0 %v960, 16
        %v962 = vpop.permute.xlu0 %961
        %vm964 = vcmask 191616
        %965 = vst.msk [vmem:[#allocation2] sm:$0xf] %vm964, %v962
        %966 = vrot.lane.b32.xlu0 %v596, 104
        %v967 = vpop.permute.xlu0 %966
        %968 = vrot.lane.b32.xlu0 %v596, 72
        %v969 = vpop.permute.xlu0 %968
        %v971 = vsel %vm608, %v967, 0
        %v974 = vsel %vm608, %v969, 0
        %976 = vmatprep.subr.bf16.mxu0 0
        %977 = vmatpush1.bf16.xpose.msra.mxu0 %v974
        %978 = vmatprep.subr.bf16.mxu0 0
        %979 = vmatpush1.bf16.xpose.msra.mxu0 0
        %980 = vmatprep.subr.bf16.mxu0 0
        %981 = vmatpush1.bf16.xpose.msra.mxu0 0
        %982 = vmatprep.subr.bf16.mxu0 0
        %983 = vmatpush1.bf16.xpose.msra.mxu0 0
        %984 = vmatprep.subr.bf16.mxu0 0
        %985 = vmatpush1.bf16.xpose.msra.mxu0 0
        %986 = vmatprep.subr.bf16.mxu0 0
        %987 = vmatpush1.bf16.xpose.msra.mxu0 0
        %988 = vmatprep.subr.bf16.mxu0 0
        %989 = vmatpush1.bf16.xpose.msra.mxu0 0
        %990 = vmatprep.subr.bf16.mxu0 0
        %991 = vmatpush1.bf16.xpose.msra.mxu0 0
        %992 = vmatprep.subr.bf16.mxu0 0
        %993 = vmatpush1.bf16.xpose.msra.mxu0 0
        %994 = vmatprep.subr.bf16.mxu0 0
        %995 = vmatpush1.bf16.xpose.msra.mxu0 0
        %996 = vmatprep.subr.bf16.mxu0 0
        %997 = vmatpush1.bf16.xpose.msra.mxu0 0
        %998 = vmatprep.subr.bf16.mxu0 0
        %999 = vmatpush1.bf16.xpose.msra.mxu0 0
        %1000 = vmatprep.subr.bf16.mxu0 0
        %1001 = vmatpush1.bf16.xpose.msra.mxu0 0
        %1002 = vmatprep.subr.bf16.mxu0 0
        %1003 = vmatpush1.bf16.xpose.msra.mxu0 0
        %1004 = vmatprep.subr.bf16.mxu0 0
        %1005 = vmatpush1.bf16.xpose.msra.mxu0 0
        %1006 = vmatprep.subr.bf16.mxu0 0
        %1007 = vmatpush1.bf16.xpose.msra.mxu0 0
        %1008 = vmatprep.mubr.bf16.mxu0 0
        %1009 = vmatmul.mubr.bf16.gmra.mrb[0].mxu0 %v971
        %v1010 = vpop.f32.mrb[0].mxu0
        %v1011 = vadd.f32 0.0, %v1010
        %v1012 = vpop.f32.mrb[0].mxu0
        %v1013 = vpop.f32.mrb[0].mxu0
        %v1014 = vpop.f32.mrb[0].mxu0
        %1015 = vdwg.mxu0
        %v1016 = vsel %vm660, %v1011, -1000000.0
        %v1017 = vsel %vm608, %v1016, -inf
        %1018 = vmax.xlane.f32.xlu0 %v1017
        %v1019 = vpop.xlane.xlu0 %1018
        %v1020 = vsub.f32 %v1016, %v1019
        %v1021 = vmul.f32 %v1020, 1.442695
        %v1022 = vpow.pop %v1021
        %v1023 = vsel %vm608, %v1022, 0.0
        %1024 = vadd.xlane.f32.xlu0 %v1023
        %v1025 = vpop.xlane.xlu0 %1024
        %v1026 = vrcp.pop %v1025
        %v1027 = vmul.f32 %v1022, %v1026
        %v1028 = vpack.c.bf16 %v1027, %v1027
        %1029 = vrot.lane.b32.xlu0 %v596, 40
        %v1030 = vpop.permute.xlu0 %1029
        %v1032 = vsel %vm608, %v1028, 0
        %v1035 = vsel %vm679, %v1030, 0
        %1037 = vmatprep.subr.bf16.mxu0 0
        %1038 = vmatpush1.bf16.msra.mxu0 %v1035
        %1039 = vmatprep.subr.bf16.mxu0 0
        %1040 = vmatpush1.bf16.msra.mxu0 0
        %1041 = vmatprep.subr.bf16.mxu0 0
        %1042 = vmatpush1.bf16.msra.mxu0 0
        %1043 = vmatprep.subr.bf16.mxu0 0
        %1044 = vmatpush1.bf16.msra.mxu0 0
        %1045 = vmatprep.subr.bf16.mxu0 0
        %1046 = vmatpush1.bf16.msra.mxu0 0
        %1047 = vmatprep.subr.bf16.mxu0 0
        %1048 = vmatpush1.bf16.msra.mxu0 0
        %1049 = vmatprep.subr.bf16.mxu0 0
        %1050 = vmatpush1.bf16.msra.mxu0 0
        %1051 = vmatprep.subr.bf16.mxu0 0
        %1052 = vmatpush1.bf16.msra.mxu0 0
        %1053 = vmatprep.subr.bf16.mxu0 0
        %1054 = vmatpush1.bf16.msra.mxu0 0
        %1055 = vmatprep.subr.bf16.mxu0 0
        %1056 = vmatpush1.bf16.msra.mxu0 0
        %1057 = vmatprep.subr.bf16.mxu0 0
        %1058 = vmatpush1.bf16.msra.mxu0 0
        %1059 = vmatprep.subr.bf16.mxu0 0
        %1060 = vmatpush1.bf16.msra.mxu0 0
        %1061 = vmatprep.subr.bf16.mxu0 0
        %1062 = vmatpush1.bf16.msra.mxu0 0
        %1063 = vmatprep.subr.bf16.mxu0 0
        %1064 = vmatpush1.bf16.msra.mxu0 0
        %1065 = vmatprep.subr.bf16.mxu0 0
        %1066 = vmatpush1.bf16.msra.mxu0 0
        %1067 = vmatprep.subr.bf16.mxu0 0
        %1068 = vmatpush1.bf16.msra.mxu0 0
        %1069 = vmatprep.mubr.bf16.mxu0 0
        %1070 = vmatmul.mubr.bf16.gmra.mrb[0].mxu0 %v1032
        %v1071 = vpop.f32.mrb[0].mxu0
        %v1072 = vadd.f32 0.0, %v1071
        %v1073 = vpop.f32.mrb[0].mxu0
        %v1074 = vpop.f32.mrb[0].mxu0
        %v1075 = vpop.f32.mrb[0].mxu0
        %1076 = vdwg.mxu0
        %v1077 = vpack.c.bf16 %v1072, %v1072
        %v1079 = vunpack.c.l.b16 %v1077
        %v1080 = vpack.c.b16 %v1079, %v1079
        %1081 = vrot.lane.b32.xlu0 %v1080, 24
        %v1082 = vpop.permute.xlu0 %1081
        %vm1084 = vcmask 257216
        %1085 = vst.msk [vmem:[#allocation2] sm:$0xf] %vm1084, %v1082
        %v1086 = vld [vmem:[#allocation2] sm:$0xf]
        %v1087 = vld [vmem:[%s501] sm:$0xf]
        %v1088 = vld [vmem:[%s501 + $0x4] sm:$0xf]
        %v1089 = vld [vmem:[%s501 + $0x8] sm:$0xf]
        %v1090 = vld [vmem:[%s501 + $0xc] sm:$0xf]
        %v1091 = vlaneseq
        %v1092 = vshrl.u32 %v1091, 7
        %v1093 = vsub.s32 0, %v1092
        %v1094 = vrot.slane %v597, %v1093
        %v1099 = vunpack.c.l.b16 %v1087
        %v1100 = vunpack.c.l.b16 %v1088
        %v1101 = vunpack.c.l.b16 %v1089
        %v1102 = vunpack.c.l.b16 %v1090
        %v1103 = vpack.c.b16 %v1100, %v1099
        %v1104 = vpack.c.b16 %v1102, %v1101
        %v1108 = vsel %vm552, %v1086, 0
        %1110 = vmatprep.subr.bf16.mxu0 0
        %1111 = vmatpush1.bf16.msra.mxu0 %v1103
        %1112 = vmatprep.subr.bf16.mxu0 0
        %1113 = vmatpush1.bf16.msra.mxu0 %v1104
        %1114 = vmatprep.subr.bf16.mxu0 0
        %1115 = vmatpush1.bf16.msra.mxu0 0
        %1116 = vmatprep.subr.bf16.mxu0 0
        %1117 = vmatpush1.bf16.msra.mxu0 0
        %1118 = vmatprep.subr.bf16.mxu0 0
        %1119 = vmatpush1.bf16.msra.mxu0 0
        %1120 = vmatprep.subr.bf16.mxu0 0
        %1121 = vmatpush1.bf16.msra.mxu0 0
        %1122 = vmatprep.subr.bf16.mxu0 0
        %1123 = vmatpush1.bf16.msra.mxu0 0
        %1124 = vmatprep.subr.bf16.mxu0 0
        %1125 = vmatpush1.bf16.msra.mxu0 0
        %1126 = vmatprep.subr.bf16.mxu0 0
        %1127 = vmatpush1.bf16.msra.mxu0 0
        %1128 = vmatprep.subr.bf16.mxu0 0
        %1129 = vmatpush1.bf16.msra.mxu0 0
        %1130 = vmatprep.subr.bf16.mxu0 0
        %1131 = vmatpush1.bf16.msra.mxu0 0
        %1132 = vmatprep.subr.bf16.mxu0 0
        %1133 = vmatpush1.bf16.msra.mxu0 0
        %1134 = vmatprep.subr.bf16.mxu0 0
        %1135 = vmatpush1.bf16.msra.mxu0 0
        %1136 = vmatprep.subr.bf16.mxu0 0
        %1137 = vmatpush1.bf16.msra.mxu0 0
        %1138 = vmatprep.subr.bf16.mxu0 0
        %1139 = vmatpush1.bf16.msra.mxu0 0
        %1140 = vmatprep.subr.bf16.mxu0 0
        %1141 = vmatpush1.bf16.msra.mxu0 0
        %1142 = vmatprep.mubr.bf16.mxu0 0
        %1143 = vmatmul.mubr.bf16.gmra.mrb[0].mxu0 %v1108
        %v1144 = vpop.f32.mrb[0].mxu0
        %v1145 = vadd.f32 %v1094, %v1144
        %v1146 = vpop.f32.mrb[0].mxu0
        %v1147 = vpop.f32.mrb[0].mxu0
        %v1148 = vpop.f32.mrb[0].mxu0
        %1149 = vdwg.mxu0
        %v1150 = vadd.f32 %v527, %v1145
        %v1151 = vsel %vm552, %v1150, 0.0
        %1152 = vadd.xlane.f32.xlu0 %v1151
        %v1153 = vpop.xlane.xlu0 %1152
        %v1154 = vrcp.pop 32.0
        %v1155 = vmul.f32 %v1153, %v1154
        %v1156 = vsub.f32 %v1150, %v1155
        %v1157 = vmul.f32 %v1156, %v1156
        %v1158 = vsel %vm552, %v1157, 0.0
        %1159 = vadd.xlane.f32.xlu0 %v1158
        %v1160 = vpop.xlane.xlu0 %1159
        %v1161 = vmul.f32 %v1160, %v1154
        %v1162 = vadd.f32 %v1161, 1e-05
        %v1163 = vrsqrt.pop %v1162
        %v1164 = vmul.f32 %v1156, %v1163
        %v1165 = vlaneseq
        %v1166 = vshrl.u32 %v1165, 7
        %v1167 = vsub.s32 0, %v1166
        %v1168 = vrot.slane %v598, %v1167
        %v1169 = vmul.f32 %v1164, %v1168
        %v1170 = vlaneseq
        %v1171 = vshrl.u32 %v1170, 7
        %v1172 = vsub.s32 0, %v1171
        %v1173 = vrot.slane %v599, %v1172
        %v1174 = vadd.f32 %v1169, %v1173
        %v1175 = vpack.c.bf16 %v1174, %v1174
        %v1176 = vld [vmem:[%s510] sm:$0xf]
        %v1177 = vld [vmem:[%s510 + $0x4] sm:$0xf]
        %v1178 = vld [vmem:[%s510 + $0x8] sm:$0xf]
        %v1179 = vld [vmem:[%s510 + $0xc] sm:$0xf]
        %v1180 = vld [vmem:[%s513] sm:$0x1]
        %v1182 = vlaneseq
        %v1183 = vshrl.u32 %v1182, 7
        %v1184 = vsub.s32 0, %v1183
        %v1185 = vrot.slane %v1180, %v1184
        %v1191 = vunpack.c.l.b16 %v1176
        %v1192 = vunpack.c.l.b16 %v1177
        %v1193 = vunpack.c.l.b16 %v1178
        %v1194 = vunpack.c.l.b16 %v1179
        %v1195 = vpack.c.b16 %v1192, %v1191
        %v1196 = vpack.c.b16 %v1194, %v1193
        %v1200 = vsel %vm552, %v1175, 0
        %1202 = vmatprep.subr.bf16.mxu0 0
        %1203 = vmatpush1.bf16.msra.mxu0 %v1195
        %1204 = vmatprep.subr.bf16.mxu0 0
        %1205 = vmatpush1.bf16.msra.mxu0 %v1196
        %1206 = vmatprep.subr.bf16.mxu0 0
        %1207 = vmatpush1.bf16.msra.mxu0 0
        %1208 = vmatprep.subr.bf16.mxu0 0
        %1209 = vmatpush1.bf16.msra.mxu0 0
        %1210 = vmatprep.subr.bf16.mxu0 0
        %1211 = vmatpush1.bf16.msra.mxu0 0
        %1212 = vmatprep.subr.bf16.mxu0 0
        %1213 = vmatpush1.bf16.msra.mxu0 0
        %1214 = vmatprep.subr.bf16.mxu0 0
        %1215 = vmatpush1.bf16.msra.mxu0 0
        %1216 = vmatprep.subr.bf16.mxu0 0
        %1217 = vmatpush1.bf16.msra.mxu0 0
        %1218 = vmatprep.subr.bf16.mxu0 0
        %1219 = vmatpush1.bf16.msra.mxu0 0
        %1220 = vmatprep.subr.bf16.mxu0 0
        %1221 = vmatpush1.bf16.msra.mxu0 0
        %1222 = vmatprep.subr.bf16.mxu0 0
        %1223 = vmatpush1.bf16.msra.mxu0 0
        %1224 = vmatprep.subr.bf16.mxu0 0
        %1225 = vmatpush1.bf16.msra.mxu0 0
        %1226 = vmatprep.subr.bf16.mxu0 0
        %1227 = vmatpush1.bf16.msra.mxu0 0
        %1228 = vmatprep.subr.bf16.mxu0 0
        %1229 = vmatpush1.bf16.msra.mxu0 0
        %1230 = vmatprep.subr.bf16.mxu0 0
        %1231 = vmatpush1.bf16.msra.mxu0 0
        %1232 = vmatprep.subr.bf16.mxu0 0
        %1233 = vmatpush1.bf16.msra.mxu0 0
        %1234 = vmatprep.mubr.bf16.mxu0 0
        %1235 = vmatmul.mubr.bf16.gmra.mrb[0].mxu0 %v1200
        %v1236 = vpop.f32.mrb[0].mxu0
        %v1237 = vadd.f32 %v1185, %v1236
        %v1238 = vpop.f32.mrb[0].mxu0
        %v1239 = vpop.f32.mrb[0].mxu0
        %v1240 = vpop.f32.mrb[0].mxu0
        %1241 = vdwg.mxu0
        %v1242 = vmax.f32 %v1237, 0.0
        %v1243 = vpack.c.bf16 %v1242, %v1242
        %v1244 = vld [vmem:[%s518] sm:$0xf]
        %v1245 = vld [vmem:[%s518 + $0x4] sm:$0xf]
        %v1246 = vld [vmem:[%s518 + $0x8] sm:$0xf]
        %v1247 = vld [vmem:[%s518 + $0xc] sm:$0xf]
        %v1248 = vld [vmem:[%s518 + $0x10] sm:$0xf]
        %v1249 = vld [vmem:[%s518 + $0x14] sm:$0xf]
        %v1250 = vld [vmem:[%s518 + $0x18] sm:$0xf]
        %v1251 = vld [vmem:[%s518 + $0x1c] sm:$0xf]
        %v1252 = vlaneseq
        %v1253 = vshrl.u32 %v1252, 7
        %v1254 = vsub.s32 0, %v1253
        %v1255 = vrot.slane %v600, %v1254
        %v1264 = vunpack.c.l.b16 %v1244
        %v1265 = vunpack.c.l.b16 %v1245
        %v1266 = vunpack.c.l.b16 %v1246
        %v1267 = vunpack.c.l.b16 %v1247
        %v1268 = vunpack.c.l.b16 %v1248
        %v1269 = vunpack.c.l.b16 %v1249
        %v1270 = vunpack.c.l.b16 %v1250
        %v1271 = vunpack.c.l.b16 %v1251
        %v1272 = vpack.c.b16 %v1265, %v1264
        %v1273 = vpack.c.b16 %v1267, %v1266
        %v1274 = vpack.c.b16 %v1269, %v1268
        %v1275 = vpack.c.b16 %v1271, %v1270
        %vm1280 = vcmask 523264
        %v1282 = vsel %vm1280, %v1243, 0
        %1284 = vmatprep.subr.bf16.mxu0 0
        %1285 = vmatpush1.bf16.msra.mxu0 %v1272
        %1286 = vmatprep.subr.bf16.mxu0 0
        %1287 = vmatpush1.bf16.msra.mxu0 %v1273
        %1288 = vmatprep.subr.bf16.mxu0 0
        %1289 = vmatpush1.bf16.msra.mxu0 %v1274
        %1290 = vmatprep.subr.bf16.mxu0 0
        %1291 = vmatpush1.bf16.msra.mxu0 %v1275
        %1292 = vmatprep.subr.bf16.mxu0 0
        %1293 = vmatpush1.bf16.msra.mxu0 0
        %1294 = vmatprep.subr.bf16.mxu0 0
        %1295 = vmatpush1.bf16.msra.mxu0 0
        %1296 = vmatprep.subr.bf16.mxu0 0
        %1297 = vmatpush1.bf16.msra.mxu0 0
        %1298 = vmatprep.subr.bf16.mxu0 0
        %1299 = vmatpush1.bf16.msra.mxu0 0
        %1300 = vmatprep.subr.bf16.mxu0 0
        %1301 = vmatpush1.bf16.msra.mxu0 0
        %1302 = vmatprep.subr.bf16.mxu0 0
        %1303 = vmatpush1.bf16.msra.mxu0 0
        %1304 = vmatprep.subr.bf16.mxu0 0
        %1305 = vmatpush1.bf16.msra.mxu0 0
        %1306 = vmatprep.subr.bf16.mxu0 0
        %1307 = vmatpush1.bf16.msra.mxu0 0
        %1308 = vmatprep.subr.bf16.mxu0 0
        %1309 = vmatpush1.bf16.msra.mxu0 0
        %1310 = vmatprep.subr.bf16.mxu0 0
        %1311 = vmatpush1.bf16.msra.mxu0 0
        %1312 = vmatprep.subr.bf16.mxu0 0
        %1313 = vmatpush1.bf16.msra.mxu0 0
        %1314 = vmatprep.subr.bf16.mxu0 0
        %1315 = vmatpush1.bf16.msra.mxu0 0
        %1316 = vmatprep.mubr.bf16.mxu0 0
        %1317 = vmatmul.mubr.bf16.gmra.mrb[0].mxu0 %v1282
        %v1318 = vpop.f32.mrb[0].mxu0
        %v1319 = vadd.f32 %v1255, %v1318
        %v1320 = vpop.f32.mrb[0].mxu0
        %v1321 = vpop.f32.mrb[0].mxu0
        %v1322 = vpop.f32.mrb[0].mxu0
        %1323 = vdwg.mxu0
        %v1324 = vadd.f32 %v1174, %v1319
        %v1325 = vsel %vm552, %v1324, 0.0
        %1326 = vadd.xlane.f32.xlu0 %v1325
        %v1327 = vpop.xlane.xlu0 %1326
        %v1328 = vmul.f32 %v1327, %v1154
        %v1329 = vsub.f32 %v1324, %v1328
        %v1330 = vmul.f32 %v1329, %v1329
        %v1331 = vsel %vm552, %v1330, 0.0
        %1332 = vadd.xlane.f32.xlu0 %v1331
        %v1333 = vpop.xlane.xlu0 %1332
        %v1334 = vmul.f32 %v1333, %v1154
        %v1335 = vadd.f32 %v1334, 1e-05
        %v1336 = vrsqrt.pop %v1335
        %v1337 = vmul.f32 %v1329, %v1336
        %v1338 = vlaneseq
        %v1339 = vshrl.u32 %v1338, 7
        %v1340 = vsub.s32 0, %v1339
        %v1341 = vrot.slane %v601, %v1340
        %v1342 = vmul.f32 %v1337, %v1341
        %v1343 = vlaneseq
        %v1344 = vshrl.u32 %v1343, 7
        %v1345 = vsub.s32 0, %v1344
        %v1346 = vrot.slane %v602, %v1345
        %v1347 = vadd.f32 %v1342, %v1346
        %1348 = vst.msk [vmem:[%s488] sm:$0xff] %vm552, %v1347
        %s1349 = sand.u32 %s283, 1
        %s1350 = scalar_lea.sflag [#allocation5], %s1349
        %s1351 = sand.u32 %s283, 1
        %s1352 = smul.addr %s1351, 8
        %s1353 = scalar_lea.vmem [#allocation8], %s1352
        // Predicated region
        $region69: #{tpu_custom_call.1} parent=55 // pred_check
          %p1354 = pneg %p293
        $region70: #{tpu_custom_call.1} parent=55 // pred_check_branch
          %1356 = sbr.rel (%p1354) target = $region72
        $region71: #{tpu_custom_call.1} parent=55 // pred_region
          %s1358 = ssub.s32 128, 128
          %1359 = vsyncadd %s1350, %s1358
          %s1360 = smul.addr %s33, 128
          %s1361 = scalar_lea.hbm %s9, %s1360
          %s1363 = sshll.u32 %s1353, 4
          %s1364 = int_to_ptr.vmem [resolvable:$true] %s1363
          %1366 = dma.vmem_to_hbm [thread:$0]  %s1364, 128, %s1361, %s1350
        $region72: #{tpu_custom_call.1} parent=55 // pred_fallthru
          _
      $region56: #{tpu_custom_call.1} parent=5 // pred_fallthru
        _
      %p1367 = scmp.le.s32.totalorder 2, %s24
      // Predicated region
      $region73: #{tpu_custom_call.1} parent=5 // pred_check
        %p1368 = pneg %p1367
      $region74: #{tpu_custom_call.1} parent=5 // pred_check_branch
        %1370 = sbr.rel (%p1368) target = $region76
      $region75: #{tpu_custom_call.1} parent=5 // pred_region
        %s1371 = ssub.s32 %s24, 2
        // Predicated region
        $region77: #{tpu_custom_call.1} parent=75 // pred_check
          %p1372 = pneg %p299
        $region78: #{tpu_custom_call.1} parent=75 // pred_check_branch
          %1374 = sbr.rel (%p1372) target = $region80
        $region79: #{tpu_custom_call.1} parent=75 // pred_region
          %s1375 = sand.u32 %s284, 1
          %s1376 = scalar_lea.sflag [#allocation5], %s1375
          %s1377 = sand.u32 %s284, 1
          %s1378 = smul.addr %s1377, 8
          %s1379 = scalar_lea.vmem [#allocation8], %s1378
          %1380 = dma.done %s1376, 128
        $region80: #{tpu_custom_call.1} parent=75 // pred_fallthru
          _
      $region76: #{tpu_custom_call.1} parent=5 // pred_fallthru
        _
    $region6: #{tpu_custom_call.1} parent=1 // loop_footer
      %s28 = sadd.s32 1, %s24
    $region7: #{tpu_custom_call.1} parent=1 // loop_footer_branch
      %23 = sbr.rel target = $region3
    $region8: #{tpu_custom_call.1} parent=1 // loop_exit
      _
    %1381 = vsyncpa [#allocation4], 1
    %s1382 = scalar_lea.sflag [#allocation4], 1
    %1383 = vsyncpa %s1382, 1
    %1384 = vsyncpa [#allocation7], 1
    %s1385 = scalar_lea.sflag [#allocation7], 1
    %1386 = vsyncpa %s1385, 1
    %1387 = vsyncpa [#allocation5], 1
    %s1388 = scalar_lea.sflag [#allocation5], 1
    %1389 = vsyncpa %s1388, 1

</llo_original>
